<compile_context>
chip_gen: v5e
topology: v5e:2x2
jax: 0.10.0
libtpu: 0.0.40
codegen_flags: <defaults>
</compile_context>

<pallas_src>
import jax
import jax.numpy as jnp
from jax.experimental import pallas as pl
from jax.experimental.pallas import tpu as pltpu

# ---------------- config (small, consistent with the module) ----------------
N_EMBD     = 32
N_HEAD     = 4
HEAD_SIZE  = N_EMBD // N_HEAD
N_LAYER    = 2
BLOCK_SIZE = 8          # max sequence length
VOCAB      = 65
VOCAB_PAD  = 128        # lane-dense padding for embedding rows / lm_head cols
LN_EPS     = 1e-5
BATCH      = 2


# ----------------------------- kernel helpers --------------------------------
def _layernorm(x, w, b):
    """x: (T, C) f32, w/b: (1, C) f32.  Matches torch.nn.LayerNorm(eps=1e-5)."""
    mu = jnp.mean(x, axis=-1, keepdims=True)
    var = jnp.mean((x - mu) ** 2, axis=-1, keepdims=True)
    return (x - mu) * jax.lax.rsqrt(var + LN_EPS) * w + b


# ------------------------- fused whole-model kernel ---------------------------
def gpt_kernel(idx_ref, tok_emb_ref, pos_ref, lnf_ref, wh_ref, bh_ref,
               wqkv_ref, wo_ref, w1_ref, w2_ref, ln_ref, linb_ref, b1_ref,
               logits_ref):
    T = idx_ref.shape[1]
    C, H, HS = N_EMBD, N_HEAD, HEAD_SIZE

    # ---- token one-hot gather (bf16) + position embedding; x stays (T, C) ----
    ids = idx_ref[0]                                                # (T, 1) int32
    iota = jax.lax.broadcasted_iota(jnp.int32, (T, VOCAB_PAD), 1)
    onehot = (iota == ids).astype(jnp.bfloat16)                     # (T, 128)
    tok = jnp.dot(onehot, tok_emb_ref[...],
                  preferred_element_type=jnp.float32)               # (T, C) f32
    x = tok + pos_ref[...]                                          # (T, C) f32

    # ---- causal mask, shared across layers, broadcast over the head axis ----
    row = jax.lax.broadcasted_iota(jnp.int32, (T, T), 0)
    col = jax.lax.broadcasted_iota(jnp.int32, (T, T), 1)
    causal = (col <= row)[None]                                     # (1, T, T)

    # ---- transformer blocks (static unroll over stacked layer weights) ----
    for l in range(N_LAYER):
        lnp = ln_ref[l]                     # (4, C): ln1_w, ln1_b, ln2_w, ln2_b
        lb = linb_ref[l]                    # (2, C): proj bias, ffwd-out bias

        # -------- multi-head causal self-attention on ln1(x), heads batched --
        h = _layernorm(x, lnp[0:1], lnp[1:2]).astype(jnp.bfloat16)  # (T, C)
        qkv = jnp.dot(h, wqkv_ref[l],
                      preferred_element_type=jnp.float32)           # (T, 3C) f32
        # columns are head-major (h, {q,k,v}, hs); q already scaled by hs**-0.5
        hqkv = jnp.stack([qkv[:, hd * 3 * HS:(hd + 1) * 3 * HS]
                          for hd in range(H)], axis=0)              # (H, T, 3hs)
        q = hqkv[:, :, 0:HS]                                        # (H, T, hs)
        k = hqkv[:, :, HS:2 * HS]                                   # (H, T, hs)
        v = hqkv[:, :, 2 * HS:3 * HS]                               # (H, T, hs)

        s = jnp.einsum('htd,hkd->htk', q, k,
                       preferred_element_type=jnp.float32)          # (H, T, T)
        s = jnp.where(causal, s, -1e30)        # diagonal always unmasked -> safe
        s = s - jnp.max(s, axis=-1, keepdims=True)
        p = jnp.exp(s)                                              # one exp, all heads
        p = p * pl.reciprocal(jnp.sum(p, axis=-1, keepdims=True), approx=True)
        o = jnp.einsum('htk,hkd->htd', p, v,
                       preferred_element_type=jnp.float32)          # (H, T, hs)

        # output projection folded over heads (no concat of head outputs)
        oc = jnp.einsum('htd,hdc->htc', o.astype(jnp.bfloat16), wo_ref[l],
                        preferred_element_type=jnp.float32)         # (H, T, C)
        sa = jnp.sum(oc, axis=0) + lb[0:1]                          # (T, C)
        x = x + sa                                  # residual (dropout = identity)

        # ------------------------- feed-forward on ln2(x) --------------------
        h2 = _layernorm(x, lnp[2:3], lnp[3:4]).astype(jnp.bfloat16)
        f = jnp.dot(h2, w1_ref[l], preferred_element_type=jnp.float32) + b1_ref[l]
        f = jnp.maximum(f, 0.0).astype(jnp.bfloat16)                # ReLU
        y = jnp.dot(f, w2_ref[l], preferred_element_type=jnp.float32) + lb[1:2]
        x = x + y                                   # residual (dropout = identity)

    # ---- final LayerNorm + lm_head (lane-dense padded output) ----
    lnf = lnf_ref[...]                                              # (2, C)
    xf = _layernorm(x, lnf[0:1], lnf[1:2]).astype(jnp.bfloat16)
    logits_ref[0] = (jnp.dot(xf, wh_ref[...], preferred_element_type=jnp.float32)
                     + bh_ref[...])                                 # (T, 128)


# ------------------------------- wrapper --------------------------------------
def _full_spec(shape):
    """Full-array block, resident across all grid steps (constant index map)."""
    zero = (0,) * len(shape)
    return pl.BlockSpec(tuple(shape), lambda b, _z=zero: _z)


def gpt_forward(idx, params):
    """idx: (B, T) int32 token ids. Returns (logits (B, T, VOCAB), loss=None)."""
    B, T = idx.shape
    idx3 = idx.astype(jnp.int32)[..., None]                 # (B, T, 1)
    pos = params['pos_emb'][:T]                             # (T, C)
    args = (idx3, params['tok_emb'], pos, params['lnf'], params['w_head'],
            params['b_head'], params['wqkv'], params['wo'], params['w1'],
            params['w2'], params['ln'], params['linb'], params['b1'])

    in_specs = [pl.BlockSpec((1, T, 1), lambda b: (b, 0, 0))]   # per-batch ids
    in_specs += [_full_spec(a.shape) for a in args[1:]]         # resident weights

    out = pl.pallas_call(
        gpt_kernel,
        out_shape=jax.ShapeDtypeStruct((B, T, VOCAB_PAD), jnp.float32),
        grid=(B,),
        in_specs=in_specs,
        out_specs=pl.BlockSpec((1, T, VOCAB_PAD), lambda b: (b, 0, 0)),
        compiler_params=pltpu.CompilerParams(
            dimension_semantics=("parallel",)),
    )(*args)
    logits = out[:, :, :VOCAB]
    return logits, None


# ------------------------------ parameter init --------------------------------
def init_params(key):
    """Mirrors _init_weights: Linear/Embedding ~ N(0, 0.02), biases = 0,
    LayerNorm weight=1 bias=0.  Per-layer weights stacked on a leading
    (N_LAYER, ...) axis; matmul weights stored bf16 (halved DMA bytes)."""
    C, H, HS = N_EMBD, N_HEAD, HEAD_SIZE
    keys = iter(jax.random.split(key, 32))
    nrm = lambda shape: 0.02 * jax.random.normal(next(keys), shape, jnp.float32)
    bf16 = lambda a: a.astype(jnp.bfloat16)

    tok = nrm((VOCAB, C))
    tok_pad = jnp.zeros((VOCAB_PAD, C), jnp.float32).at[:VOCAB].set(tok)
    w_head = nrm((C, VOCAB))
    w_head_pad = jnp.zeros((C, VOCAB_PAD), jnp.float32).at[:, :VOCAB].set(w_head)

    scale = HS ** (-0.5)
    wqkv_l, wo_l, w1_l, w2_l = [], [], [], []
    for _ in range(N_LAYER):
        wq = nrm((C, H, HS)) * scale        # fold 1/sqrt(head_size) into q proj
        wk = nrm((C, H, HS))
        wv = nrm((C, H, HS))
        # columns ordered head-major (h, {q,k,v}, hs)
        wqkv_l.append(jnp.stack([wq, wk, wv], axis=2).reshape(C, 3 * C))
        wo_l.append(nrm((C, C)).reshape(H, HS, C))   # proj folded per head
        w1_l.append(nrm((C, 4 * C)))
        w2_l.append(nrm((4 * C, C)))

    ln_one = jnp.stack([jnp.ones(C), jnp.zeros(C),
                        jnp.ones(C), jnp.zeros(C)])             # (4, C)

    return {
        'tok_emb': bf16(tok_pad),                               # (128, C) bf16
        'pos_emb': nrm((BLOCK_SIZE, C)),                        # (T, C) f32
        'lnf': jnp.stack([jnp.ones(C), jnp.zeros(C)]),          # (2, C) f32
        'w_head': bf16(w_head_pad),                             # (C, 128) bf16
        'b_head': jnp.zeros((1, VOCAB_PAD), jnp.float32),       # (1, 128) f32
        'wqkv': bf16(jnp.stack(wqkv_l)),                        # (L, C, 3C) bf16
        'wo': bf16(jnp.stack(wo_l)),                            # (L, H, hs, C) bf16
        'w1': bf16(jnp.stack(w1_l)),                            # (L, C, 4C) bf16
        'w2': bf16(jnp.stack(w2_l)),                            # (L, 4C, C) bf16
        'ln': jnp.tile(ln_one[None], (N_LAYER, 1, 1)),          # (L, 4, C) f32
        'linb': jnp.zeros((N_LAYER, 2, C), jnp.float32),        # (L, 2, C) f32
        'b1': jnp.zeros((N_LAYER, 1, 4 * C), jnp.float32),      # (L, 1, 4C) f32
    }


# ----------------------------------- main --------------------------------------
if __name__ == "__main__":
    key = jax.random.PRNGKey(0)
    pkey, dkey = jax.random.split(key)
    params = init_params(pkey)

    idx = jax.random.randint(dkey, (BATCH, BLOCK_SIZE), 0, VOCAB, jnp.int32)

    logits, loss = gpt_forward(idx, params)
    logits = jax.block_until_ready(logits)

    assert logits.shape == (BATCH, BLOCK_SIZE, VOCAB)
    assert bool(jnp.all(jnp.isfinite(logits)))
    print("KERNEL_OK")
</pallas_src>

<mosaic_0001>
module attributes {stable_mosaic.version = 11 : i64} {
  func.func @gpt_kernel(%arg0: i32, %arg1: memref<1x8x1xi32, #tpu.memory_space<vmem>>, %arg2: memref<128x32xbf16, #tpu.memory_space<vmem>>, %arg3: memref<8x32xf32, #tpu.memory_space<vmem>>, %arg4: memref<2x32xf32, #tpu.memory_space<vmem>>, %arg5: memref<32x128xbf16, #tpu.memory_space<vmem>>, %arg6: memref<1x128xf32, #tpu.memory_space<vmem>>, %arg7: memref<2x32x96xbf16, #tpu.memory_space<vmem>>, %arg8: memref<2x4x8x32xbf16, #tpu.memory_space<vmem>>, %arg9: memref<2x32x128xbf16, #tpu.memory_space<vmem>>, %arg10: memref<2x128x32xbf16, #tpu.memory_space<vmem>>, %arg11: memref<2x4x32xf32, #tpu.memory_space<vmem>>, %arg12: memref<2x2x32xf32, #tpu.memory_space<vmem>>, %arg13: memref<2x1x128xf32, #tpu.memory_space<vmem>>, %arg14: memref<1x8x128xf32, #tpu.memory_space<vmem>>) attributes {dimension_semantics = [#tpu.dimension_semantics<parallel>], iteration_bounds = array<i64: 2>, scalar_prefetch = 0 : i64, scratch_operands = 0 : i64, tpu.core_type = #tpu.core_type<tc>, window_params = [{transform_indices = @transform_0, window_bounds = array<i64: 1, 8, 1>}, {pipeline_mode = #tpu.pipeline_mode<synchronous>, transform_indices = @transform_1, window_bounds = array<i64: 128, 32>}, {pipeline_mode = #tpu.pipeline_mode<synchronous>, transform_indices = @transform_2, window_bounds = array<i64: 8, 32>}, {pipeline_mode = #tpu.pipeline_mode<synchronous>, transform_indices = @transform_3, window_bounds = array<i64: 2, 32>}, {pipeline_mode = #tpu.pipeline_mode<synchronous>, transform_indices = @transform_4, window_bounds = array<i64: 32, 128>}, {pipeline_mode = #tpu.pipeline_mode<synchronous>, transform_indices = @transform_5, window_bounds = array<i64: 1, 128>}, {pipeline_mode = #tpu.pipeline_mode<synchronous>, transform_indices = @transform_6, window_bounds = array<i64: 2, 32, 96>}, {pipeline_mode = #tpu.pipeline_mode<synchronous>, transform_indices = @transform_7, window_bounds = array<i64: 2, 4, 8, 32>}, {pipeline_mode = #tpu.pipeline_mode<synchronous>, transform_indices = @transform_8, window_bounds = array<i64: 2, 32, 128>}, {pipeline_mode = #tpu.pipeline_mode<synchronous>, transform_indices = @transform_9, window_bounds = array<i64: 2, 128, 32>}, {pipeline_mode = #tpu.pipeline_mode<synchronous>, transform_indices = @transform_10, window_bounds = array<i64: 2, 4, 32>}, {pipeline_mode = #tpu.pipeline_mode<synchronous>, transform_indices = @transform_11, window_bounds = array<i64: 2, 2, 32>}, {pipeline_mode = #tpu.pipeline_mode<synchronous>, transform_indices = @transform_12, window_bounds = array<i64: 2, 1, 128>}, {transform_indices = @transform_13, window_bounds = array<i64: 1, 8, 128>}]} {
    %c0 = arith.constant 0 : index
    %c0_0 = arith.constant 0 : index
    %c0_1 = arith.constant 0 : index
    %0 = vector.load %arg1[%c0, %c0_0, %c0_1] : memref<1x8x1xi32, #tpu.memory_space<vmem>>, vector<1x8x1xi32>
    %1 = vector.shape_cast %0 : vector<1x8x1xi32> to vector<8x1xi32>
    %2 = tpu.iota {dimensions = array<i32: 1>} : vector<8x128xi32>
    %3 = vector.broadcast %1 : vector<8x1xi32> to vector<8x128xi32>
    %4 = arith.cmpi eq, %2, %3 : vector<8x128xi32>
    %5 = arith.extui %4 : vector<8x128xi1> to vector<8x128xi32>
    %6 = arith.sitofp %5 : vector<8x128xi32> to vector<8x128xf32>
    %7 = arith.truncf %6 : vector<8x128xf32> to vector<8x128xbf16>
    %c0_2 = arith.constant 0 : index
    %c0_3 = arith.constant 0 : index
    %8 = vector.load %arg2[%c0_2, %c0_3] : memref<128x32xbf16, #tpu.memory_space<vmem>>, vector<128x32xbf16>
    %cst = arith.constant dense<0.000000e+00> : vector<8x32xf32>
    %9 = tpu.matmul %7, %8, %cst {dimension_numbers = #tpu.dot_dimension_numbers<[1], [0], [0], [1], [0, 0, 1, 1], [], []>} : vector<8x128xbf16>, vector<128x32xbf16>, vector<8x32xf32> -> vector<8x32xf32>
    %c0_4 = arith.constant 0 : index
    %c0_5 = arith.constant 0 : index
    %10 = vector.load %arg3[%c0_4, %c0_5] : memref<8x32xf32, #tpu.memory_space<vmem>>, vector<8x32xf32>
    %11 = arith.addf %9, %10 : vector<8x32xf32>
    %12 = tpu.iota {dimensions = array<i32: 0>} : vector<8x8xi32>
    %13 = tpu.iota {dimensions = array<i32: 1>} : vector<8x8xi32>
    %14 = arith.cmpi sle, %13, %12 : vector<8x8xi32>
    %15 = vector.shape_cast %14 : vector<8x8xi1> to vector<1x8x8xi1>
    %c0_6 = arith.constant 0 : index
    %c0_7 = arith.constant 0 : index
    %c0_8 = arith.constant 0 : index
    %16 = vector.load %arg11[%c0_6, %c0_7, %c0_8] : memref<2x4x32xf32, #tpu.memory_space<vmem>>, vector<1x4x32xf32>
    %17 = vector.shape_cast %16 : vector<1x4x32xf32> to vector<4x32xf32>
    %c0_9 = arith.constant 0 : index
    %c0_10 = arith.constant 0 : index
    %c0_11 = arith.constant 0 : index
    %18 = vector.load %arg12[%c0_9, %c0_10, %c0_11] : memref<2x2x32xf32, #tpu.memory_space<vmem>>, vector<1x2x32xf32>
    %19 = vector.shape_cast %18 : vector<1x2x32xf32> to vector<2x32xf32>
    %20 = vector.extract_strided_slice %17 {offsets = [0, 0], sizes = [1, 32], strides = [1, 1]} : vector<4x32xf32> to vector<1x32xf32>
    %21 = vector.extract_strided_slice %17 {offsets = [1, 0], sizes = [1, 32], strides = [1, 1]} : vector<4x32xf32> to vector<1x32xf32>
    %cst_12 = arith.constant dense<0.000000e+00> : vector<8xf32>
    %22 = vector.multi_reduction <add>, %11, %cst_12 [1] : vector<8x32xf32> to vector<8xf32>
    %23 = vector.shape_cast %22 : vector<8xf32> to vector<8x1xf32>
    %cst_13 = arith.constant 3.200000e+01 : f32
    %24 = vector.broadcast %cst_13 : f32 to vector<8x1xf32>
    %25 = arith.divf %23, %24 : vector<8x1xf32>
    %26 = vector.broadcast %25 : vector<8x1xf32> to vector<8x32xf32>
    %27 = arith.subf %11, %26 : vector<8x32xf32>
    %28 = arith.mulf %27, %27 : vector<8x32xf32>
    %cst_14 = arith.constant dense<0.000000e+00> : vector<8xf32>
    %29 = vector.multi_reduction <add>, %28, %cst_14 [1] : vector<8x32xf32> to vector<8xf32>
    %30 = vector.shape_cast %29 : vector<8xf32> to vector<8x1xf32>
    %cst_15 = arith.constant 3.200000e+01 : f32
    %31 = vector.broadcast %cst_15 : f32 to vector<8x1xf32>
    %32 = arith.divf %30, %31 : vector<8x1xf32>
    %33 = vector.broadcast %25 : vector<8x1xf32> to vector<8x32xf32>
    %34 = arith.subf %11, %33 : vector<8x32xf32>
    %cst_16 = arith.constant 9.99999974E-6 : f32
    %35 = vector.broadcast %cst_16 : f32 to vector<8x1xf32>
    %36 = arith.addf %32, %35 : vector<8x1xf32>
    %37 = math.rsqrt %36 : vector<8x1xf32>
    %38 = vector.broadcast %37 : vector<8x1xf32> to vector<8x32xf32>
    %39 = arith.mulf %34, %38 : vector<8x32xf32>
    %40 = vector.broadcast %20 : vector<1x32xf32> to vector<8x32xf32>
    %41 = arith.mulf %39, %40 : vector<8x32xf32>
    %42 = vector.broadcast %21 : vector<1x32xf32> to vector<8x32xf32>
    %43 = arith.addf %41, %42 : vector<8x32xf32>
    %44 = arith.truncf %43 : vector<8x32xf32> to vector<8x32xbf16>
    %c0_17 = arith.constant 0 : index
    %c0_18 = arith.constant 0 : index
    %c0_19 = arith.constant 0 : index
    %45 = vector.load %arg7[%c0_17, %c0_18, %c0_19] : memref<2x32x96xbf16, #tpu.memory_space<vmem>>, vector<1x32x96xbf16>
    %46 = vector.shape_cast %45 : vector<1x32x96xbf16> to vector<32x96xbf16>
    %cst_20 = arith.constant dense<0.000000e+00> : vector<8x96xf32>
    %47 = tpu.matmul %44, %46, %cst_20 {dimension_numbers = #tpu.dot_dimension_numbers<[1], [0], [0], [1], [0, 0, 1, 1], [], []>} : vector<8x32xbf16>, vector<32x96xbf16>, vector<8x96xf32> -> vector<8x96xf32>
    %48 = vector.extract_strided_slice %47 {offsets = [0, 0], sizes = [8, 24], strides = [1, 1]} : vector<8x96xf32> to vector<8x24xf32>
    %49 = vector.extract_strided_slice %47 {offsets = [0, 24], sizes = [8, 24], strides = [1, 1]} : vector<8x96xf32> to vector<8x24xf32>
    %50 = vector.extract_strided_slice %47 {offsets = [0, 48], sizes = [8, 24], strides = [1, 1]} : vector<8x96xf32> to vector<8x24xf32>
    %51 = vector.extract_strided_slice %47 {offsets = [0, 72], sizes = [8, 24], strides = [1, 1]} : vector<8x96xf32> to vector<8x24xf32>
    %52 = vector.shape_cast %48 : vector<8x24xf32> to vector<1x8x24xf32>
    %53 = vector.shape_cast %49 : vector<8x24xf32> to vector<1x8x24xf32>
    %54 = vector.shape_cast %50 : vector<8x24xf32> to vector<1x8x24xf32>
    %55 = vector.shape_cast %51 : vector<8x24xf32> to vector<1x8x24xf32>
    %56 = tpu.concatenate %52, %53, %54, %55 in 0 : vector<1x8x24xf32>, vector<1x8x24xf32>, vector<1x8x24xf32>, vector<1x8x24xf32> -> vector<4x8x24xf32>
    %57 = vector.extract_strided_slice %56 {offsets = [0, 0, 0], sizes = [4, 8, 8], strides = [1, 1, 1]} : vector<4x8x24xf32> to vector<4x8x8xf32>
    %58 = vector.extract_strided_slice %56 {offsets = [0, 0, 8], sizes = [4, 8, 8], strides = [1, 1, 1]} : vector<4x8x24xf32> to vector<4x8x8xf32>
    %59 = vector.extract_strided_slice %56 {offsets = [0, 0, 16], sizes = [4, 8, 8], strides = [1, 1, 1]} : vector<4x8x24xf32> to vector<4x8x8xf32>
    "tpu.trace_start"() <{level = 10 : i32, message = "htd,hkd->htk"}> : () -> ()
    %cst_21 = arith.constant dense<0.000000e+00> : vector<4x8x8xf32>
    %60 = tpu.matmul %57, %58, %cst_21 {dimension_numbers = #tpu.dot_dimension_numbers<[2], [2], [1], [1], [0, 0, 0, 1, 1, 1], [0], [0]>} : vector<4x8x8xf32>, vector<4x8x8xf32>, vector<4x8x8xf32> -> vector<4x8x8xf32>
    %cst_22 = arith.constant -1.000000e+30 : f32
    "tpu.trace_stop"() : () -> ()
    %61 = vector.shape_cast %15 : vector<1x8x8xi1> to vector<1x8x8xi1>
    %62 = vector.broadcast %61 : vector<1x8x8xi1> to vector<4x8x8xi1>
    %63 = vector.broadcast %cst_22 : f32 to vector<4x8x8xf32>
    %64 = arith.select %62, %60, %63 : vector<4x8x8xi1>, vector<4x8x8xf32>
    %cst_23 = arith.constant dense<0xFF800000> : vector<4x8xf32>
    %65 = vector.multi_reduction <maximumf>, %64, %cst_23 [2] : vector<4x8x8xf32> to vector<4x8xf32>
    %66 = vector.shape_cast %65 : vector<4x8xf32> to vector<4x8x1xf32>
    %67 = vector.broadcast %66 : vector<4x8x1xf32> to vector<4x8x8xf32>
    %68 = arith.subf %64, %67 : vector<4x8x8xf32>
    %69 = math.exp %68 : vector<4x8x8xf32>
    %cst_24 = arith.constant dense<0.000000e+00> : vector<4x8xf32>
    %70 = vector.multi_reduction <add>, %69, %cst_24 [2] : vector<4x8x8xf32> to vector<4x8xf32>
    %71 = vector.shape_cast %70 : vector<4x8xf32> to vector<4x8x1xf32>
    %72 = tpu.reciprocal %71 {approx = true} : vector<4x8x1xf32> -> vector<4x8x1xf32>
    %73 = vector.broadcast %72 : vector<4x8x1xf32> to vector<4x8x8xf32>
    %74 = arith.mulf %69, %73 : vector<4x8x8xf32>
    "tpu.trace_start"() <{level = 10 : i32, message = "htk,hkd->htd"}> : () -> ()
    %cst_25 = arith.constant dense<0.000000e+00> : vector<4x8x8xf32>
    %75 = tpu.matmul %74, %59, %cst_25 {dimension_numbers = #tpu.dot_dimension_numbers<[2], [1], [1], [2], [0, 0, 0, 1, 1, 2], [0], [0]>} : vector<4x8x8xf32>, vector<4x8x8xf32>, vector<4x8x8xf32> -> vector<4x8x8xf32>
    "tpu.trace_stop"() : () -> ()
    %76 = arith.truncf %75 : vector<4x8x8xf32> to vector<4x8x8xbf16>
    %c0_26 = arith.constant 0 : index
    %c0_27 = arith.constant 0 : index
    %c0_28 = arith.constant 0 : index
    %c0_29 = arith.constant 0 : index
    %77 = vector.load %arg8[%c0_26, %c0_27, %c0_28, %c0_29] : memref<2x4x8x32xbf16, #tpu.memory_space<vmem>>, vector<1x4x8x32xbf16>
    %78 = vector.shape_cast %77 : vector<1x4x8x32xbf16> to vector<4x8x32xbf16>
    "tpu.trace_start"() <{level = 10 : i32, message = "htd,hdc->htc"}> : () -> ()
    %cst_30 = arith.constant dense<0.000000e+00> : vector<4x8x32xf32>
    %79 = tpu.matmul %76, %78, %cst_30 {dimension_numbers = #tpu.dot_dimension_numbers<[2], [1], [1], [2], [0, 0, 0, 1, 1, 2], [0], [0]>} : vector<4x8x8xbf16>, vector<4x8x32xbf16>, vector<4x8x32xf32> -> vector<4x8x32xf32>
    "tpu.trace_stop"() : () -> ()
    %cst_31 = arith.constant dense<0.000000e+00> : vector<8x32xf32>
    %80 = vector.multi_reduction <add>, %79, %cst_31 [0] : vector<4x8x32xf32> to vector<8x32xf32>
    %81 = vector.extract_strided_slice %19 {offsets = [0, 0], sizes = [1, 32], strides = [1, 1]} : vector<2x32xf32> to vector<1x32xf32>
    %82 = vector.broadcast %81 : vector<1x32xf32> to vector<8x32xf32>
    %83 = arith.addf %80, %82 : vector<8x32xf32>
    %84 = arith.addf %11, %83 : vector<8x32xf32>
    %85 = vector.extract_strided_slice %17 {offsets = [2, 0], sizes = [1, 32], strides = [1, 1]} : vector<4x32xf32> to vector<1x32xf32>
    %86 = vector.extract_strided_slice %17 {offsets = [3, 0], sizes = [1, 32], strides = [1, 1]} : vector<4x32xf32> to vector<1x32xf32>
    %cst_32 = arith.constant dense<0.000000e+00> : vector<8xf32>
    %87 = vector.multi_reduction <add>, %84, %cst_32 [1] : vector<8x32xf32> to vector<8xf32>
    %88 = vector.shape_cast %87 : vector<8xf32> to vector<8x1xf32>
    %cst_33 = arith.constant 3.200000e+01 : f32
    %89 = vector.broadcast %cst_33 : f32 to vector<8x1xf32>
    %90 = arith.divf %88, %89 : vector<8x1xf32>
    %91 = vector.broadcast %90 : vector<8x1xf32> to vector<8x32xf32>
    %92 = arith.subf %84, %91 : vector<8x32xf32>
    %93 = arith.mulf %92, %92 : vector<8x32xf32>
    %cst_34 = arith.constant dense<0.000000e+00> : vector<8xf32>
    %94 = vector.multi_reduction <add>, %93, %cst_34 [1] : vector<8x32xf32> to vector<8xf32>
    %95 = vector.shape_cast %94 : vector<8xf32> to vector<8x1xf32>
    %cst_35 = arith.constant 3.200000e+01 : f32
    %96 = vector.broadcast %cst_35 : f32 to vector<8x1xf32>
    %97 = arith.divf %95, %96 : vector<8x1xf32>
    %98 = vector.broadcast %90 : vector<8x1xf32> to vector<8x32xf32>
    %99 = arith.subf %84, %98 : vector<8x32xf32>
    %cst_36 = arith.constant 9.99999974E-6 : f32
    %100 = vector.broadcast %cst_36 : f32 to vector<8x1xf32>
    %101 = arith.addf %97, %100 : vector<8x1xf32>
    %102 = math.rsqrt %101 : vector<8x1xf32>
    %103 = vector.broadcast %102 : vector<8x1xf32> to vector<8x32xf32>
    %104 = arith.mulf %99, %103 : vector<8x32xf32>
    %105 = vector.broadcast %85 : vector<1x32xf32> to vector<8x32xf32>
    %106 = arith.mulf %104, %105 : vector<8x32xf32>
    %107 = vector.broadcast %86 : vector<1x32xf32> to vector<8x32xf32>
    %108 = arith.addf %106, %107 : vector<8x32xf32>
    %109 = arith.truncf %108 : vector<8x32xf32> to vector<8x32xbf16>
    %c0_37 = arith.constant 0 : index
    %c0_38 = arith.constant 0 : index
    %c0_39 = arith.constant 0 : index
    %110 = vector.load %arg9[%c0_37, %c0_38, %c0_39] : memref<2x32x128xbf16, #tpu.memory_space<vmem>>, vector<1x32x128xbf16>
    %111 = vector.shape_cast %110 : vector<1x32x128xbf16> to vector<32x128xbf16>
    %cst_40 = arith.constant dense<0.000000e+00> : vector<8x128xf32>
    %112 = tpu.matmul %109, %111, %cst_40 {dimension_numbers = #tpu.dot_dimension_numbers<[1], [0], [0], [1], [0, 0, 1, 1], [], []>} : vector<8x32xbf16>, vector<32x128xbf16>, vector<8x128xf32> -> vector<8x128xf32>
    %c0_41 = arith.constant 0 : index
    %c0_42 = arith.constant 0 : index
    %c0_43 = arith.constant 0 : index
    %113 = vector.load %arg13[%c0_41, %c0_42, %c0_43] : memref<2x1x128xf32, #tpu.memory_space<vmem>>, vector<1x1x128xf32>
    %114 = vector.shape_cast %113 : vector<1x1x128xf32> to vector<1x128xf32>
    %115 = vector.broadcast %114 : vector<1x128xf32> to vector<8x128xf32>
    %116 = arith.addf %112, %115 : vector<8x128xf32>
    %cst_44 = arith.constant 0.000000e+00 : f32
    %117 = vector.broadcast %cst_44 : f32 to vector<8x128xf32>
    %118 = arith.maximumf %116, %117 : vector<8x128xf32>
    %119 = arith.truncf %118 : vector<8x128xf32> to vector<8x128xbf16>
    %c0_45 = arith.constant 0 : index
    %c0_46 = arith.constant 0 : index
    %c0_47 = arith.constant 0 : index
    %120 = vector.load %arg10[%c0_45, %c0_46, %c0_47] : memref<2x128x32xbf16, #tpu.memory_space<vmem>>, vector<1x128x32xbf16>
    %121 = vector.shape_cast %120 : vector<1x128x32xbf16> to vector<128x32xbf16>
    %cst_48 = arith.constant dense<0.000000e+00> : vector<8x32xf32>
    %122 = tpu.matmul %119, %121, %cst_48 {dimension_numbers = #tpu.dot_dimension_numbers<[1], [0], [0], [1], [0, 0, 1, 1], [], []>} : vector<8x128xbf16>, vector<128x32xbf16>, vector<8x32xf32> -> vector<8x32xf32>
    %123 = vector.extract_strided_slice %19 {offsets = [1, 0], sizes = [1, 32], strides = [1, 1]} : vector<2x32xf32> to vector<1x32xf32>
    %124 = vector.broadcast %123 : vector<1x32xf32> to vector<8x32xf32>
    %125 = arith.addf %122, %124 : vector<8x32xf32>
    %126 = arith.addf %84, %125 : vector<8x32xf32>
    %c1 = arith.constant 1 : index
    %c0_49 = arith.constant 0 : index
    %c0_50 = arith.constant 0 : index
    %127 = vector.load %arg11[%c1, %c0_49, %c0_50] : memref<2x4x32xf32, #tpu.memory_space<vmem>>, vector<1x4x32xf32>
    %128 = vector.shape_cast %127 : vector<1x4x32xf32> to vector<4x32xf32>
    %c1_51 = arith.constant 1 : index
    %c0_52 = arith.constant 0 : index
    %c0_53 = arith.constant 0 : index
    %129 = vector.load %arg12[%c1_51, %c0_52, %c0_53] : memref<2x2x32xf32, #tpu.memory_space<vmem>>, vector<1x2x32xf32>
    %130 = vector.shape_cast %129 : vector<1x2x32xf32> to vector<2x32xf32>
    %131 = vector.extract_strided_slice %128 {offsets = [0, 0], sizes = [1, 32], strides = [1, 1]} : vector<4x32xf32> to vector<1x32xf32>
    %132 = vector.extract_strided_slice %128 {offsets = [1, 0], sizes = [1, 32], strides = [1, 1]} : vector<4x32xf32> to vector<1x32xf32>
    %cst_54 = arith.constant dense<0.000000e+00> : vector<8xf32>
    %133 = vector.multi_reduction <add>, %126, %cst_54 [1] : vector<8x32xf32> to vector<8xf32>
    %134 = vector.shape_cast %133 : vector<8xf32> to vector<8x1xf32>
    %cst_55 = arith.constant 3.200000e+01 : f32
    %135 = vector.broadcast %cst_55 : f32 to vector<8x1xf32>
    %136 = arith.divf %134, %135 : vector<8x1xf32>
    %137 = vector.broadcast %136 : vector<8x1xf32> to vector<8x32xf32>
    %138 = arith.subf %126, %137 : vector<8x32xf32>
    %139 = arith.mulf %138, %138 : vector<8x32xf32>
    %cst_56 = arith.constant dense<0.000000e+00> : vector<8xf32>
    %140 = vector.multi_reduction <add>, %139, %cst_56 [1] : vector<8x32xf32> to vector<8xf32>
    %141 = vector.shape_cast %140 : vector<8xf32> to vector<8x1xf32>
    %cst_57 = arith.constant 3.200000e+01 : f32
    %142 = vector.broadcast %cst_57 : f32 to vector<8x1xf32>
    %143 = arith.divf %141, %142 : vector<8x1xf32>
    %144 = vector.broadcast %136 : vector<8x1xf32> to vector<8x32xf32>
    %145 = arith.subf %126, %144 : vector<8x32xf32>
    %cst_58 = arith.constant 9.99999974E-6 : f32
    %146 = vector.broadcast %cst_58 : f32 to vector<8x1xf32>
    %147 = arith.addf %143, %146 : vector<8x1xf32>
    %148 = math.rsqrt %147 : vector<8x1xf32>
    %149 = vector.broadcast %148 : vector<8x1xf32> to vector<8x32xf32>
    %150 = arith.mulf %145, %149 : vector<8x32xf32>
    %151 = vector.broadcast %131 : vector<1x32xf32> to vector<8x32xf32>
    %152 = arith.mulf %150, %151 : vector<8x32xf32>
    %153 = vector.broadcast %132 : vector<1x32xf32> to vector<8x32xf32>
    %154 = arith.addf %152, %153 : vector<8x32xf32>
    %155 = arith.truncf %154 : vector<8x32xf32> to vector<8x32xbf16>
    %c1_59 = arith.constant 1 : index
    %c0_60 = arith.constant 0 : index
    %c0_61 = arith.constant 0 : index
    %156 = vector.load %arg7[%c1_59, %c0_60, %c0_61] : memref<2x32x96xbf16, #tpu.memory_space<vmem>>, vector<1x32x96xbf16>
    %157 = vector.shape_cast %156 : vector<1x32x96xbf16> to vector<32x96xbf16>
    %cst_62 = arith.constant dense<0.000000e+00> : vector<8x96xf32>
    %158 = tpu.matmul %155, %157, %cst_62 {dimension_numbers = #tpu.dot_dimension_numbers<[1], [0], [0], [1], [0, 0, 1, 1], [], []>} : vector<8x32xbf16>, vector<32x96xbf16>, vector<8x96xf32> -> vector<8x96xf32>
    %159 = vector.extract_strided_slice %158 {offsets = [0, 0], sizes = [8, 24], strides = [1, 1]} : vector<8x96xf32> to vector<8x24xf32>
    %160 = vector.extract_strided_slice %158 {offsets = [0, 24], sizes = [8, 24], strides = [1, 1]} : vector<8x96xf32> to vector<8x24xf32>
    %161 = vector.extract_strided_slice %158 {offsets = [0, 48], sizes = [8, 24], strides = [1, 1]} : vector<8x96xf32> to vector<8x24xf32>
    %162 = vector.extract_strided_slice %158 {offsets = [0, 72], sizes = [8, 24], strides = [1, 1]} : vector<8x96xf32> to vector<8x24xf32>
    %163 = vector.shape_cast %159 : vector<8x24xf32> to vector<1x8x24xf32>
    %164 = vector.shape_cast %160 : vector<8x24xf32> to vector<1x8x24xf32>
    %165 = vector.shape_cast %161 : vector<8x24xf32> to vector<1x8x24xf32>
    %166 = vector.shape_cast %162 : vector<8x24xf32> to vector<1x8x24xf32>
    %167 = tpu.concatenate %163, %164, %165, %166 in 0 : vector<1x8x24xf32>, vector<1x8x24xf32>, vector<1x8x24xf32>, vector<1x8x24xf32> -> vector<4x8x24xf32>
    %168 = vector.extract_strided_slice %167 {offsets = [0, 0, 0], sizes = [4, 8, 8], strides = [1, 1, 1]} : vector<4x8x24xf32> to vector<4x8x8xf32>
    %169 = vector.extract_strided_slice %167 {offsets = [0, 0, 8], sizes = [4, 8, 8], strides = [1, 1, 1]} : vector<4x8x24xf32> to vector<4x8x8xf32>
    %170 = vector.extract_strided_slice %167 {offsets = [0, 0, 16], sizes = [4, 8, 8], strides = [1, 1, 1]} : vector<4x8x24xf32> to vector<4x8x8xf32>
    "tpu.trace_start"() <{level = 10 : i32, message = "htd,hkd->htk"}> : () -> ()
    %cst_63 = arith.constant dense<0.000000e+00> : vector<4x8x8xf32>
    %171 = tpu.matmul %168, %169, %cst_63 {dimension_numbers = #tpu.dot_dimension_numbers<[2], [2], [1], [1], [0, 0, 0, 1, 1, 1], [0], [0]>} : vector<4x8x8xf32>, vector<4x8x8xf32>, vector<4x8x8xf32> -> vector<4x8x8xf32>
    %cst_64 = arith.constant -1.000000e+30 : f32
    "tpu.trace_stop"() : () -> ()
    %172 = vector.shape_cast %15 : vector<1x8x8xi1> to vector<1x8x8xi1>
    %173 = vector.broadcast %172 : vector<1x8x8xi1> to vector<4x8x8xi1>
    %174 = vector.broadcast %cst_64 : f32 to vector<4x8x8xf32>
    %175 = arith.select %173, %171, %174 : vector<4x8x8xi1>, vector<4x8x8xf32>
    %cst_65 = arith.constant dense<0xFF800000> : vector<4x8xf32>
    %176 = vector.multi_reduction <maximumf>, %175, %cst_65 [2] : vector<4x8x8xf32> to vector<4x8xf32>
    %177 = vector.shape_cast %176 : vector<4x8xf32> to vector<4x8x1xf32>
    %178 = vector.broadcast %177 : vector<4x8x1xf32> to vector<4x8x8xf32>
    %179 = arith.subf %175, %178 : vector<4x8x8xf32>
    %180 = math.exp %179 : vector<4x8x8xf32>
    %cst_66 = arith.constant dense<0.000000e+00> : vector<4x8xf32>
    %181 = vector.multi_reduction <add>, %180, %cst_66 [2] : vector<4x8x8xf32> to vector<4x8xf32>
    %182 = vector.shape_cast %181 : vector<4x8xf32> to vector<4x8x1xf32>
    %183 = tpu.reciprocal %182 {approx = true} : vector<4x8x1xf32> -> vector<4x8x1xf32>
    %184 = vector.broadcast %183 : vector<4x8x1xf32> to vector<4x8x8xf32>
    %185 = arith.mulf %180, %184 : vector<4x8x8xf32>
    "tpu.trace_start"() <{level = 10 : i32, message = "htk,hkd->htd"}> : () -> ()
    %cst_67 = arith.constant dense<0.000000e+00> : vector<4x8x8xf32>
    %186 = tpu.matmul %185, %170, %cst_67 {dimension_numbers = #tpu.dot_dimension_numbers<[2], [1], [1], [2], [0, 0, 0, 1, 1, 2], [0], [0]>} : vector<4x8x8xf32>, vector<4x8x8xf32>, vector<4x8x8xf32> -> vector<4x8x8xf32>
    "tpu.trace_stop"() : () -> ()
    %187 = arith.truncf %186 : vector<4x8x8xf32> to vector<4x8x8xbf16>
    %c1_68 = arith.constant 1 : index
    %c0_69 = arith.constant 0 : index
    %c0_70 = arith.constant 0 : index
    %c0_71 = arith.constant 0 : index
    %188 = vector.load %arg8[%c1_68, %c0_69, %c0_70, %c0_71] : memref<2x4x8x32xbf16, #tpu.memory_space<vmem>>, vector<1x4x8x32xbf16>
    %189 = vector.shape_cast %188 : vector<1x4x8x32xbf16> to vector<4x8x32xbf16>
    "tpu.trace_start"() <{level = 10 : i32, message = "htd,hdc->htc"}> : () -> ()
    %cst_72 = arith.constant dense<0.000000e+00> : vector<4x8x32xf32>
    %190 = tpu.matmul %187, %189, %cst_72 {dimension_numbers = #tpu.dot_dimension_numbers<[2], [1], [1], [2], [0, 0, 0, 1, 1, 2], [0], [0]>} : vector<4x8x8xbf16>, vector<4x8x32xbf16>, vector<4x8x32xf32> -> vector<4x8x32xf32>
    "tpu.trace_stop"() : () -> ()
    %cst_73 = arith.constant dense<0.000000e+00> : vector<8x32xf32>
    %191 = vector.multi_reduction <add>, %190, %cst_73 [0] : vector<4x8x32xf32> to vector<8x32xf32>
    %192 = vector.extract_strided_slice %130 {offsets = [0, 0], sizes = [1, 32], strides = [1, 1]} : vector<2x32xf32> to vector<1x32xf32>
    %193 = vector.broadcast %192 : vector<1x32xf32> to vector<8x32xf32>
    %194 = arith.addf %191, %193 : vector<8x32xf32>
    %195 = arith.addf %126, %194 : vector<8x32xf32>
    %196 = vector.extract_strided_slice %128 {offsets = [2, 0], sizes = [1, 32], strides = [1, 1]} : vector<4x32xf32> to vector<1x32xf32>
    %197 = vector.extract_strided_slice %128 {offsets = [3, 0], sizes = [1, 32], strides = [1, 1]} : vector<4x32xf32> to vector<1x32xf32>
    %cst_74 = arith.constant dense<0.000000e+00> : vector<8xf32>
    %198 = vector.multi_reduction <add>, %195, %cst_74 [1] : vector<8x32xf32> to vector<8xf32>
    %199 = vector.shape_cast %198 : vector<8xf32> to vector<8x1xf32>
    %cst_75 = arith.constant 3.200000e+01 : f32
    %200 = vector.broadcast %cst_75 : f32 to vector<8x1xf32>
    %201 = arith.divf %199, %200 : vector<8x1xf32>
    %202 = vector.broadcast %201 : vector<8x1xf32> to vector<8x32xf32>
    %203 = arith.subf %195, %202 : vector<8x32xf32>
    %204 = arith.mulf %203, %203 : vector<8x32xf32>
    %cst_76 = arith.constant dense<0.000000e+00> : vector<8xf32>
    %205 = vector.multi_reduction <add>, %204, %cst_76 [1] : vector<8x32xf32> to vector<8xf32>
    %206 = vector.shape_cast %205 : vector<8xf32> to vector<8x1xf32>
    %cst_77 = arith.constant 3.200000e+01 : f32
    %207 = vector.broadcast %cst_77 : f32 to vector<8x1xf32>
    %208 = arith.divf %206, %207 : vector<8x1xf32>
    %209 = vector.broadcast %201 : vector<8x1xf32> to vector<8x32xf32>
    %210 = arith.subf %195, %209 : vector<8x32xf32>
    %cst_78 = arith.constant 9.99999974E-6 : f32
    %211 = vector.broadcast %cst_78 : f32 to vector<8x1xf32>
    %212 = arith.addf %208, %211 : vector<8x1xf32>
    %213 = math.rsqrt %212 : vector<8x1xf32>
    %214 = vector.broadcast %213 : vector<8x1xf32> to vector<8x32xf32>
    %215 = arith.mulf %210, %214 : vector<8x32xf32>
    %216 = vector.broadcast %196 : vector<1x32xf32> to vector<8x32xf32>
    %217 = arith.mulf %215, %216 : vector<8x32xf32>
    %218 = vector.broadcast %197 : vector<1x32xf32> to vector<8x32xf32>
    %219 = arith.addf %217, %218 : vector<8x32xf32>
    %220 = arith.truncf %219 : vector<8x32xf32> to vector<8x32xbf16>
    %c1_79 = arith.constant 1 : index
    %c0_80 = arith.constant 0 : index
    %c0_81 = arith.constant 0 : index
    %221 = vector.load %arg9[%c1_79, %c0_80, %c0_81] : memref<2x32x128xbf16, #tpu.memory_space<vmem>>, vector<1x32x128xbf16>
    %222 = vector.shape_cast %221 : vector<1x32x128xbf16> to vector<32x128xbf16>
    %cst_82 = arith.constant dense<0.000000e+00> : vector<8x128xf32>
    %223 = tpu.matmul %220, %222, %cst_82 {dimension_numbers = #tpu.dot_dimension_numbers<[1], [0], [0], [1], [0, 0, 1, 1], [], []>} : vector<8x32xbf16>, vector<32x128xbf16>, vector<8x128xf32> -> vector<8x128xf32>
    %c1_83 = arith.constant 1 : index
    %c0_84 = arith.constant 0 : index
    %c0_85 = arith.constant 0 : index
    %224 = vector.load %arg13[%c1_83, %c0_84, %c0_85] : memref<2x1x128xf32, #tpu.memory_space<vmem>>, vector<1x1x128xf32>
    %225 = vector.shape_cast %224 : vector<1x1x128xf32> to vector<1x128xf32>
    %226 = vector.broadcast %225 : vector<1x128xf32> to vector<8x128xf32>
    %227 = arith.addf %223, %226 : vector<8x128xf32>
    %cst_86 = arith.constant 0.000000e+00 : f32
    %228 = vector.broadcast %cst_86 : f32 to vector<8x128xf32>
    %229 = arith.maximumf %227, %228 : vector<8x128xf32>
    %230 = arith.truncf %229 : vector<8x128xf32> to vector<8x128xbf16>
    %c1_87 = arith.constant 1 : index
    %c0_88 = arith.constant 0 : index
    %c0_89 = arith.constant 0 : index
    %231 = vector.load %arg10[%c1_87, %c0_88, %c0_89] : memref<2x128x32xbf16, #tpu.memory_space<vmem>>, vector<1x128x32xbf16>
    %232 = vector.shape_cast %231 : vector<1x128x32xbf16> to vector<128x32xbf16>
    %cst_90 = arith.constant dense<0.000000e+00> : vector<8x32xf32>
    %233 = tpu.matmul %230, %232, %cst_90 {dimension_numbers = #tpu.dot_dimension_numbers<[1], [0], [0], [1], [0, 0, 1, 1], [], []>} : vector<8x128xbf16>, vector<128x32xbf16>, vector<8x32xf32> -> vector<8x32xf32>
    %234 = vector.extract_strided_slice %130 {offsets = [1, 0], sizes = [1, 32], strides = [1, 1]} : vector<2x32xf32> to vector<1x32xf32>
    %235 = vector.broadcast %234 : vector<1x32xf32> to vector<8x32xf32>
    %236 = arith.addf %233, %235 : vector<8x32xf32>
    %237 = arith.addf %195, %236 : vector<8x32xf32>
    %c0_91 = arith.constant 0 : index
    %c0_92 = arith.constant 0 : index
    %238 = vector.load %arg4[%c0_91, %c0_92] : memref<2x32xf32, #tpu.memory_space<vmem>>, vector<2x32xf32>
    %239 = vector.extract_strided_slice %238 {offsets = [0, 0], sizes = [1, 32], strides = [1, 1]} : vector<2x32xf32> to vector<1x32xf32>
    %240 = vector.extract_strided_slice %238 {offsets = [1, 0], sizes = [1, 32], strides = [1, 1]} : vector<2x32xf32> to vector<1x32xf32>
    %cst_93 = arith.constant dense<0.000000e+00> : vector<8xf32>
    %241 = vector.multi_reduction <add>, %237, %cst_93 [1] : vector<8x32xf32> to vector<8xf32>
    %242 = vector.shape_cast %241 : vector<8xf32> to vector<8x1xf32>
    %cst_94 = arith.constant 3.200000e+01 : f32
    %243 = vector.broadcast %cst_94 : f32 to vector<8x1xf32>
    %244 = arith.divf %242, %243 : vector<8x1xf32>
    %245 = vector.broadcast %244 : vector<8x1xf32> to vector<8x32xf32>
    %246 = arith.subf %237, %245 : vector<8x32xf32>
    %247 = arith.mulf %246, %246 : vector<8x32xf32>
    %cst_95 = arith.constant dense<0.000000e+00> : vector<8xf32>
    %248 = vector.multi_reduction <add>, %247, %cst_95 [1] : vector<8x32xf32> to vector<8xf32>
    %249 = vector.shape_cast %248 : vector<8xf32> to vector<8x1xf32>
    %cst_96 = arith.constant 3.200000e+01 : f32
    %250 = vector.broadcast %cst_96 : f32 to vector<8x1xf32>
    %251 = arith.divf %249, %250 : vector<8x1xf32>
    %252 = vector.broadcast %244 : vector<8x1xf32> to vector<8x32xf32>
    %253 = arith.subf %237, %252 : vector<8x32xf32>
    %cst_97 = arith.constant 9.99999974E-6 : f32
    %254 = vector.broadcast %cst_97 : f32 to vector<8x1xf32>
    %255 = arith.addf %251, %254 : vector<8x1xf32>
    %256 = math.rsqrt %255 : vector<8x1xf32>
    %257 = vector.broadcast %256 : vector<8x1xf32> to vector<8x32xf32>
    %258 = arith.mulf %253, %257 : vector<8x32xf32>
    %259 = vector.broadcast %239 : vector<1x32xf32> to vector<8x32xf32>
    %260 = arith.mulf %258, %259 : vector<8x32xf32>
    %261 = vector.broadcast %240 : vector<1x32xf32> to vector<8x32xf32>
    %262 = arith.addf %260, %261 : vector<8x32xf32>
    %263 = arith.truncf %262 : vector<8x32xf32> to vector<8x32xbf16>
    %c0_98 = arith.constant 0 : index
    %c0_99 = arith.constant 0 : index
    %264 = vector.load %arg5[%c0_98, %c0_99] : memref<32x128xbf16, #tpu.memory_space<vmem>>, vector<32x128xbf16>
    %cst_100 = arith.constant dense<0.000000e+00> : vector<8x128xf32>
    %265 = tpu.matmul %263, %264, %cst_100 {dimension_numbers = #tpu.dot_dimension_numbers<[1], [0], [0], [1], [0, 0, 1, 1], [], []>} : vector<8x32xbf16>, vector<32x128xbf16>, vector<8x128xf32> -> vector<8x128xf32>
    %c0_101 = arith.constant 0 : index
    %c0_102 = arith.constant 0 : index
    %266 = vector.load %arg6[%c0_101, %c0_102] : memref<1x128xf32, #tpu.memory_space<vmem>>, vector<1x128xf32>
    %267 = vector.broadcast %266 : vector<1x128xf32> to vector<8x128xf32>
    %268 = arith.addf %265, %267 : vector<8x128xf32>
    %c0_103 = arith.constant 0 : index
    %c0_104 = arith.constant 0 : index
    %c0_105 = arith.constant 0 : index
    %269 = vector.load %arg14[%c0_103, %c0_104, %c0_105] : memref<1x8x128xf32, #tpu.memory_space<vmem>>, vector<1x8x128xf32>
    %270 = vector.shape_cast %269 : vector<1x8x128xf32> to vector<8x128xf32>
    %271 = vector.shape_cast %268 : vector<8x128xf32> to vector<1x8x128xf32>
    tpu.vector_store %arg14[%c0_103, %c0_104, %c0_105], %271 {strides = array<i32>} : memref<1x8x128xf32, #tpu.memory_space<vmem>>, vector<1x8x128xf32>,
    return
  }
  func.func @transform_0(%arg0: i32) -> (i32, i32, i32) {
    %c0_i32 = arith.constant 0 : i32
    %c0_i32_0 = arith.constant 0 : i32
    %c0_i32_1 = arith.constant 0 : i32
    return %arg0, %c0_i32, %c0_i32_0 : i32, i32, i32
  }
  func.func @transform_1(%arg0: i32) -> (i32, i32) {
    %c0_i32 = arith.constant 0 : i32
    %c0_i32_0 = arith.constant 0 : i32
    %c0_i32_1 = arith.constant 0 : i32
    return %c0_i32, %c0_i32_0 : i32, i32
  }
  func.func @transform_2(%arg0: i32) -> (i32, i32) {
    %c0_i32 = arith.constant 0 : i32
    %c0_i32_0 = arith.constant 0 : i32
    %c0_i32_1 = arith.constant 0 : i32
    return %c0_i32, %c0_i32_0 : i32, i32
  }
  func.func @transform_3(%arg0: i32) -> (i32, i32) {
    %c0_i32 = arith.constant 0 : i32
    %c0_i32_0 = arith.constant 0 : i32
    %c0_i32_1 = arith.constant 0 : i32
    return %c0_i32, %c0_i32_0 : i32, i32
  }
  func.func @transform_4(%arg0: i32) -> (i32, i32) {
    %c0_i32 = arith.constant 0 : i32
    %c0_i32_0 = arith.constant 0 : i32
    %c0_i32_1 = arith.constant 0 : i32
    return %c0_i32, %c0_i32_0 : i32, i32
  }
  func.func @transform_5(%arg0: i32) -> (i32, i32) {
    %c0_i32 = arith.constant 0 : i32
    %c0_i32_0 = arith.constant 0 : i32
    %c0_i32_1 = arith.constant 0 : i32
    return %c0_i32, %c0_i32_0 : i32, i32
  }
  func.func @transform_6(%arg0: i32) -> (i32, i32, i32) {
    %c0_i32 = arith.constant 0 : i32
    %c0_i32_0 = arith.constant 0 : i32
    %c0_i32_1 = arith.constant 0 : i32
    %c0_i32_2 = arith.constant 0 : i32
    return %c0_i32, %c0_i32_0, %c0_i32_1 : i32, i32, i32
  }
  func.func @transform_7(%arg0: i32) -> (i32, i32, i32, i32) {
    %c0_i32 = arith.constant 0 : i32
    %c0_i32_0 = arith.constant 0 : i32
    %c0_i32_1 = arith.constant 0 : i32
    %c0_i32_2 = arith.constant 0 : i32
    %c0_i32_3 = arith.constant 0 : i32
    return %c0_i32, %c0_i32_0, %c0_i32_1, %c0_i32_2 : i32, i32, i32, i32
  }
  func.func @transform_8(%arg0: i32) -> (i32, i32, i32) {
    %c0_i32 = arith.constant 0 : i32
    %c0_i32_0 = arith.constant 0 : i32
    %c0_i32_1 = arith.constant 0 : i32
    %c0_i32_2 = arith.constant 0 : i32
    return %c0_i32, %c0_i32_0, %c0_i32_1 : i32, i32, i32
  }
  func.func @transform_9(%arg0: i32) -> (i32, i32, i32) {
    %c0_i32 = arith.constant 0 : i32
    %c0_i32_0 = arith.constant 0 : i32
    %c0_i32_1 = arith.constant 0 : i32
    %c0_i32_2 = arith.constant 0 : i32
    return %c0_i32, %c0_i32_0, %c0_i32_1 : i32, i32, i32
  }
  func.func @transform_10(%arg0: i32) -> (i32, i32, i32) {
    %c0_i32 = arith.constant 0 : i32
    %c0_i32_0 = arith.constant 0 : i32
    %c0_i32_1 = arith.constant 0 : i32
    %c0_i32_2 = arith.constant 0 : i32
    return %c0_i32, %c0_i32_0, %c0_i32_1 : i32, i32, i32
  }
  func.func @transform_11(%arg0: i32) -> (i32, i32, i32) {
    %c0_i32 = arith.constant 0 : i32
    %c0_i32_0 = arith.constant 0 : i32
    %c0_i32_1 = arith.constant 0 : i32
    %c0_i32_2 = arith.constant 0 : i32
    return %c0_i32, %c0_i32_0, %c0_i32_1 : i32, i32, i32
  }
  func.func @transform_12(%arg0: i32) -> (i32, i32, i32) {
    %c0_i32 = arith.constant 0 : i32
    %c0_i32_0 = arith.constant 0 : i32
    %c0_i32_1 = arith.constant 0 : i32
    %c0_i32_2 = arith.constant 0 : i32
    return %c0_i32, %c0_i32_0, %c0_i32_1 : i32, i32, i32
  }
  func.func @transform_13(%arg0: i32) -> (i32, i32, i32) {
    %c0_i32 = arith.constant 0 : i32
    %c0_i32_0 = arith.constant 0 : i32
    %c0_i32_1 = arith.constant 0 : i32
    return %arg0, %c0_i32, %c0_i32_0 : i32, i32, i32
  }
}

</mosaic_0001>

<llo_original>
// kernel: tpu_custom_call.1
$region0: #{tpu_custom_call.1}
  #allocation0 [shape = 'u32[]', space=smem, size = 0x4, offset = 0x4, fixed_abs, tag = 'smem constant byte address 0x4 - core index']
  #allocation1 [shape = 'u32[72,128]{1,0:T(1,128)}', space=vmem, size = 0x9000, scoped, tag = 'internal scratch']
  %s0 = inlined_call_operand.vmem [shape: s32[2,8,1], index: 0, kind: input, shape index: {}]
  %s1 = inlined_call_operand.vmem [shape: bf16[128,32], index: 1, kind: input, shape index: {}]
  %s2 = inlined_call_operand.vmem [shape: f32[8,32], index: 2, kind: input, shape index: {}]
  %s3 = inlined_call_operand.vmem [shape: f32[2,32], index: 3, kind: input, shape index: {}]
  %s4 = inlined_call_operand.vmem [shape: bf16[32,128], index: 4, kind: input, shape index: {}]
  %s5 = inlined_call_operand.vmem [shape: f32[1,128], index: 5, kind: input, shape index: {}]
  %s6 = inlined_call_operand.vmem [shape: bf16[2,32,96], index: 6, kind: input, shape index: {}]
  %s7 = inlined_call_operand.vmem [shape: bf16[2,4,8,32], index: 7, kind: input, shape index: {}]
  %s8 = inlined_call_operand.vmem [shape: bf16[2,32,128], index: 8, kind: input, shape index: {}]
  %s9 = inlined_call_operand.vmem [shape: bf16[2,128,32], index: 9, kind: input, shape index: {}]
  %s10 = inlined_call_operand.vmem [shape: f32[2,4,32], index: 10, kind: input, shape index: {}]
  %s11 = inlined_call_operand.vmem [shape: f32[2,2,32], index: 11, kind: input, shape index: {}]
  %s12 = inlined_call_operand.vmem [shape: f32[2,1,128], index: 12, kind: input, shape index: {}]
  %s13 = inlined_call_operand.hbm [shape: f32[2,8,128], index: 13, kind: output, shape index: {}]
  %s14 = sld [smem:[#allocation0]]
  $region85: #{tpu_custom_call.1} parent=0
    _
  %s16 = ssub.s32 1, %s14
  %s17 = scalar_select 0, %s16, %s14
  $region1: #{tpu_custom_call.1} parent=0
    #allocation2 [shape = 'u8[8192]{0}', space=vmem, size = 0x2000, scoped, tag = 'output window, operand 0']
    #allocation3 [shape = 's32[2]{0}', space=sflag, size = 0x8, scoped, tag = 'scoped memory for tpu_custom_call.1']
    %18 = vsyncpa [#allocation3], 0
    %s19 = scalar_lea.sflag [#allocation3], 1
    %20 = vsyncpa %s19, 0
    loop: start=0, step=1, limit=4
    $region2: #{tpu_custom_call.1} parent=1 // loop_pre_header
      _
    $region3: #{tpu_custom_call.1} parent=1 // loop_header
      %s22 = sphi 0, %s26
      %p23 = scmp.ge.s32.totalorder %s22, 4
      %s32 = sphi 0, %s34
      %s35 = sphi 0, %s32
      %s36 = sphi 0, %s35
      %s52 = sphi 0, %s36
      %s56 = sphi 0, %s56
      %s58 = sphi 0, %s56
      %s59 = sphi 0, %s58
      %s73 = sphi 0, %s59
      %s77 = sphi 0, %s77
      %s79 = sphi 0, %s77
      %s80 = sphi 0, %s79
      %s94 = sphi 0, %s80
      %s98 = sphi 0, %s98
      %s100 = sphi 0, %s98
      %s101 = sphi 0, %s100
      %s115 = sphi 0, %s101
      %s119 = sphi 0, %s119
      %s121 = sphi 0, %s119
      %s122 = sphi 0, %s121
      %s136 = sphi 0, %s122
      %s140 = sphi 0, %s140
      %s142 = sphi 0, %s140
      %s143 = sphi 0, %s142
      %s157 = sphi 0, %s143
      %s161 = sphi 0, %s161
      %s163 = sphi 0, %s161
      %s164 = sphi 0, %s163
      %s178 = sphi 0, %s164
      %s182 = sphi 0, %s182
      %s184 = sphi 0, %s182
      %s185 = sphi 0, %s184
      %s199 = sphi 0, %s185
      %s203 = sphi 0, %s203
      %s205 = sphi 0, %s203
      %s206 = sphi 0, %s205
      %s220 = sphi 0, %s206
      %s224 = sphi 0, %s224
      %s226 = sphi 0, %s224
      %s227 = sphi 0, %s226
      %s241 = sphi 0, %s227
      %s245 = sphi 0, %s245
      %s247 = sphi 0, %s245
      %s248 = sphi 0, %s247
      %s262 = sphi 0, %s248
      %s266 = sphi 0, %s266
      %s268 = sphi 0, %s266
      %s269 = sphi 0, %s268
      %s283 = sphi 0, %s269
      %s287 = sphi 0, %s287
      %s289 = sphi 0, %s287
      %s290 = sphi 0, %s289
      %s304 = sphi 0, %s290
      %s310 = sphi 0, %s312
      %s313 = sphi 0, %s310
      %s314 = sphi 0, %s313
      %s330 = sphi 0, %s314
    $region4: #{tpu_custom_call.1} parent=1 // loop_header_branch
      %25 = sbr.rel (%p23) target = $region8
    $region5: #{tpu_custom_call.1} parent=1 // loop_body
      %s27 = ssub.s32 %s22, 1
      %s28 = ssub.s32 %s22, 2
      %s29 = sadd.s32 %s22, 1
      %s30 = ssub.s32 %s22, %s29
      %p31 = scmp.eq.s32.totalorder %s30, 0
      %s33 = sadd.s32 %s32, 1
      %s34 = scalar_select %p31, %s32, %s33
      %p37 = pneg %p31
      %p38 = scmp.eq.s32.totalorder %s22, 1
      %p39 = por %p37, %p38
      %p40 = scmp.ne.s32.totalorder %s32, %s35
      %p41 = scmp.eq.s32.totalorder %s22, 0
      %p42 = por %p40, %p41
      %p43 = scmp.ne.s32.totalorder %s32, %s35
      %p44 = scmp.eq.s32.totalorder %s27, 1
      %p45 = por %p43, %p44
      %p46 = scmp.ne.s32.totalorder %s35, %s36
      %p47 = scmp.eq.s32.totalorder %s27, 0
      %p48 = por %p46, %p47
      %p49 = scmp.ne.s32.totalorder %s35, %s36
      %p50 = scmp.eq.s32.totalorder %s28, 1
      %p51 = por %p49, %p50
      %p53 = scmp.ne.s32.totalorder %s36, %s52
      %p54 = scmp.eq.s32.totalorder %s28, 0
      %p55 = por %p53, %p54
      %s57 = sadd.s32 %s56, 1
      %p60 = scmp.eq.s32.totalorder %s22, 1
      %p61 = scmp.ne.s32.totalorder %s56, %s58
      %p62 = scmp.eq.s32.totalorder %s22, 0
      %p63 = por %p61, %p62
      %p64 = scmp.ne.s32.totalorder %s56, %s58
      %p65 = scmp.eq.s32.totalorder %s27, 1
      %p66 = por %p64, %p65
      %p67 = scmp.ne.s32.totalorder %s58, %s59
      %p68 = scmp.eq.s32.totalorder %s27, 0
      %p69 = por %p67, %p68
      %p70 = scmp.ne.s32.totalorder %s58, %s59
      %p71 = scmp.eq.s32.totalorder %s28, 1
      %p72 = por %p70, %p71
      %p74 = scmp.ne.s32.totalorder %s59, %s73
      %p75 = scmp.eq.s32.totalorder %s28, 0
      %p76 = por %p74, %p75
      %s78 = sadd.s32 %s77, 1
      %p81 = scmp.eq.s32.totalorder %s22, 1
      %p82 = scmp.ne.s32.totalorder %s77, %s79
      %p83 = scmp.eq.s32.totalorder %s22, 0
      %p84 = por %p82, %p83
      %p85 = scmp.ne.s32.totalorder %s77, %s79
      %p86 = scmp.eq.s32.totalorder %s27, 1
      %p87 = por %p85, %p86
      %p88 = scmp.ne.s32.totalorder %s79, %s80
      %p89 = scmp.eq.s32.totalorder %s27, 0
      %p90 = por %p88, %p89
      %p91 = scmp.ne.s32.totalorder %s79, %s80
      %p92 = scmp.eq.s32.totalorder %s28, 1
      %p93 = por %p91, %p92
      %p95 = scmp.ne.s32.totalorder %s80, %s94
      %p96 = scmp.eq.s32.totalorder %s28, 0
      %p97 = por %p95, %p96
      %s99 = sadd.s32 %s98, 1
      %p102 = scmp.eq.s32.totalorder %s22, 1
      %p103 = scmp.ne.s32.totalorder %s98, %s100
      %p104 = scmp.eq.s32.totalorder %s22, 0
      %p105 = por %p103, %p104
      %p106 = scmp.ne.s32.totalorder %s98, %s100
      %p107 = scmp.eq.s32.totalorder %s27, 1
      %p108 = por %p106, %p107
      %p109 = scmp.ne.s32.totalorder %s100, %s101
      %p110 = scmp.eq.s32.totalorder %s27, 0
      %p111 = por %p109, %p110
      %p112 = scmp.ne.s32.totalorder %s100, %s101
      %p113 = scmp.eq.s32.totalorder %s28, 1
      %p114 = por %p112, %p113
      %p116 = scmp.ne.s32.totalorder %s101, %s115
      %p117 = scmp.eq.s32.totalorder %s28, 0
      %p118 = por %p116, %p117
      %s120 = sadd.s32 %s119, 1
      %p123 = scmp.eq.s32.totalorder %s22, 1
      %p124 = scmp.ne.s32.totalorder %s119, %s121
      %p125 = scmp.eq.s32.totalorder %s22, 0
      %p126 = por %p124, %p125
      %p127 = scmp.ne.s32.totalorder %s119, %s121
      %p128 = scmp.eq.s32.totalorder %s27, 1
      %p129 = por %p127, %p128
      %p130 = scmp.ne.s32.totalorder %s121, %s122
      %p131 = scmp.eq.s32.totalorder %s27, 0
      %p132 = por %p130, %p131
      %p133 = scmp.ne.s32.totalorder %s121, %s122
      %p134 = scmp.eq.s32.totalorder %s28, 1
      %p135 = por %p133, %p134
      %p137 = scmp.ne.s32.totalorder %s122, %s136
      %p138 = scmp.eq.s32.totalorder %s28, 0
      %p139 = por %p137, %p138
      %s141 = sadd.s32 %s140, 1
      %p144 = scmp.eq.s32.totalorder %s22, 1
      %p145 = scmp.ne.s32.totalorder %s140, %s142
      %p146 = scmp.eq.s32.totalorder %s22, 0
      %p147 = por %p145, %p146
      %p148 = scmp.ne.s32.totalorder %s140, %s142
      %p149 = scmp.eq.s32.totalorder %s27, 1
      %p150 = por %p148, %p149
      %p151 = scmp.ne.s32.totalorder %s142, %s143
      %p152 = scmp.eq.s32.totalorder %s27, 0
      %p153 = por %p151, %p152
      %p154 = scmp.ne.s32.totalorder %s142, %s143
      %p155 = scmp.eq.s32.totalorder %s28, 1
      %p156 = por %p154, %p155
      %p158 = scmp.ne.s32.totalorder %s143, %s157
      %p159 = scmp.eq.s32.totalorder %s28, 0
      %p160 = por %p158, %p159
      %s162 = sadd.s32 %s161, 1
      %p165 = scmp.eq.s32.totalorder %s22, 1
      %p166 = scmp.ne.s32.totalorder %s161, %s163
      %p167 = scmp.eq.s32.totalorder %s22, 0
      %p168 = por %p166, %p167
      %p169 = scmp.ne.s32.totalorder %s161, %s163
      %p170 = scmp.eq.s32.totalorder %s27, 1
      %p171 = por %p169, %p170
      %p172 = scmp.ne.s32.totalorder %s163, %s164
      %p173 = scmp.eq.s32.totalorder %s27, 0
      %p174 = por %p172, %p173
      %p175 = scmp.ne.s32.totalorder %s163, %s164
      %p176 = scmp.eq.s32.totalorder %s28, 1
      %p177 = por %p175, %p176
      %p179 = scmp.ne.s32.totalorder %s164, %s178
      %p180 = scmp.eq.s32.totalorder %s28, 0
      %p181 = por %p179, %p180
      %s183 = sadd.s32 %s182, 1
      %p186 = scmp.eq.s32.totalorder %s22, 1
      %p187 = scmp.ne.s32.totalorder %s182, %s184
      %p188 = scmp.eq.s32.totalorder %s22, 0
      %p189 = por %p187, %p188
      %p190 = scmp.ne.s32.totalorder %s182, %s184
      %p191 = scmp.eq.s32.totalorder %s27, 1
      %p192 = por %p190, %p191
      %p193 = scmp.ne.s32.totalorder %s184, %s185
      %p194 = scmp.eq.s32.totalorder %s27, 0
      %p195 = por %p193, %p194
      %p196 = scmp.ne.s32.totalorder %s184, %s185
      %p197 = scmp.eq.s32.totalorder %s28, 1
      %p198 = por %p196, %p197
      %p200 = scmp.ne.s32.totalorder %s185, %s199
      %p201 = scmp.eq.s32.totalorder %s28, 0
      %p202 = por %p200, %p201
      %s204 = sadd.s32 %s203, 1
      %p207 = scmp.eq.s32.totalorder %s22, 1
      %p208 = scmp.ne.s32.totalorder %s203, %s205
      %p209 = scmp.eq.s32.totalorder %s22, 0
      %p210 = por %p208, %p209
      %p211 = scmp.ne.s32.totalorder %s203, %s205
      %p212 = scmp.eq.s32.totalorder %s27, 1
      %p213 = por %p211, %p212
      %p214 = scmp.ne.s32.totalorder %s205, %s206
      %p215 = scmp.eq.s32.totalorder %s27, 0
      %p216 = por %p214, %p215
      %p217 = scmp.ne.s32.totalorder %s205, %s206
      %p218 = scmp.eq.s32.totalorder %s28, 1
      %p219 = por %p217, %p218
      %p221 = scmp.ne.s32.totalorder %s206, %s220
      %p222 = scmp.eq.s32.totalorder %s28, 0
      %p223 = por %p221, %p222
      %s225 = sadd.s32 %s224, 1
      %p228 = scmp.eq.s32.totalorder %s22, 1
      %p229 = scmp.ne.s32.totalorder %s224, %s226
      %p230 = scmp.eq.s32.totalorder %s22, 0
      %p231 = por %p229, %p230
      %p232 = scmp.ne.s32.totalorder %s224, %s226
      %p233 = scmp.eq.s32.totalorder %s27, 1
      %p234 = por %p232, %p233
      %p235 = scmp.ne.s32.totalorder %s226, %s227
      %p236 = scmp.eq.s32.totalorder %s27, 0
      %p237 = por %p235, %p236
      %p238 = scmp.ne.s32.totalorder %s226, %s227
      %p239 = scmp.eq.s32.totalorder %s28, 1
      %p240 = por %p238, %p239
      %p242 = scmp.ne.s32.totalorder %s227, %s241
      %p243 = scmp.eq.s32.totalorder %s28, 0
      %p244 = por %p242, %p243
      %s246 = sadd.s32 %s245, 1
      %p249 = scmp.eq.s32.totalorder %s22, 1
      %p250 = scmp.ne.s32.totalorder %s245, %s247
      %p251 = scmp.eq.s32.totalorder %s22, 0
      %p252 = por %p250, %p251
      %p253 = scmp.ne.s32.totalorder %s245, %s247
      %p254 = scmp.eq.s32.totalorder %s27, 1
      %p255 = por %p253, %p254
      %p256 = scmp.ne.s32.totalorder %s247, %s248
      %p257 = scmp.eq.s32.totalorder %s27, 0
      %p258 = por %p256, %p257
      %p259 = scmp.ne.s32.totalorder %s247, %s248
      %p260 = scmp.eq.s32.totalorder %s28, 1
      %p261 = por %p259, %p260
      %p263 = scmp.ne.s32.totalorder %s248, %s262
      %p264 = scmp.eq.s32.totalorder %s28, 0
      %p265 = por %p263, %p264
      %s267 = sadd.s32 %s266, 1
      %p270 = scmp.eq.s32.totalorder %s22, 1
      %p271 = scmp.ne.s32.totalorder %s266, %s268
      %p272 = scmp.eq.s32.totalorder %s22, 0
      %p273 = por %p271, %p272
      %p274 = scmp.ne.s32.totalorder %s266, %s268
      %p275 = scmp.eq.s32.totalorder %s27, 1
      %p276 = por %p274, %p275
      %p277 = scmp.ne.s32.totalorder %s268, %s269
      %p278 = scmp.eq.s32.totalorder %s27, 0
      %p279 = por %p277, %p278
      %p280 = scmp.ne.s32.totalorder %s268, %s269
      %p281 = scmp.eq.s32.totalorder %s28, 1
      %p282 = por %p280, %p281
      %p284 = scmp.ne.s32.totalorder %s269, %s283
      %p285 = scmp.eq.s32.totalorder %s28, 0
      %p286 = por %p284, %p285
      %s288 = sadd.s32 %s287, 1
      %p291 = scmp.eq.s32.totalorder %s22, 1
      %p292 = scmp.ne.s32.totalorder %s287, %s289
      %p293 = scmp.eq.s32.totalorder %s22, 0
      %p294 = por %p292, %p293
      %p295 = scmp.ne.s32.totalorder %s287, %s289
      %p296 = scmp.eq.s32.totalorder %s27, 1
      %p297 = por %p295, %p296
      %p298 = scmp.ne.s32.totalorder %s289, %s290
      %p299 = scmp.eq.s32.totalorder %s27, 0
      %p300 = por %p298, %p299
      %p301 = scmp.ne.s32.totalorder %s289, %s290
      %p302 = scmp.eq.s32.totalorder %s28, 1
      %p303 = por %p301, %p302
      %p305 = scmp.ne.s32.totalorder %s290, %s304
      %p306 = scmp.eq.s32.totalorder %s28, 0
      %p307 = por %p305, %p306
      %s308 = ssub.s32 %s22, %s29
      %p309 = scmp.eq.s32.totalorder %s308, 0
      %s311 = sadd.s32 %s310, 1
      %s312 = scalar_select %p309, %s310, %s311
      %p315 = pneg %p309
      %p316 = scmp.eq.s32.totalorder %s22, 1
      %p317 = por %p315, %p316
      %p318 = scmp.ne.s32.totalorder %s310, %s313
      %p319 = scmp.eq.s32.totalorder %s22, 0
      %p320 = por %p318, %p319
      %p321 = scmp.ne.s32.totalorder %s310, %s313
      %p322 = scmp.eq.s32.totalorder %s27, 1
      %p323 = por %p321, %p322
      %p324 = scmp.ne.s32.totalorder %s313, %s314
      %p325 = scmp.eq.s32.totalorder %s27, 0
      %p326 = por %p324, %p325
      %p327 = scmp.ne.s32.totalorder %s313, %s314
      %p328 = scmp.eq.s32.totalorder %s28, 1
      %p329 = por %p327, %p328
      %p331 = scmp.ne.s32.totalorder %s314, %s330
      %p332 = scmp.eq.s32.totalorder %s28, 0
      %p333 = por %p331, %p332
      %p334 = scmp.le.s32.totalorder 1, %s22
      %p335 = scmp.lt.s32.totalorder %s22, 3
      %p336 = pnand %p334, %p335
      %p337 = pneg %p336
      // Predicated region
      $region9: #{tpu_custom_call.1} parent=5 // pred_check
        _
      $region10: #{tpu_custom_call.1} parent=5 // pred_check_branch
        %339 = sbr.rel (%p336) target = $region12
      $region11: #{tpu_custom_call.1} parent=5 // pred_region
        %s340 = ssub.s32 %s22, 1
        // Predicated region
        $region13: #{tpu_custom_call.1} parent=11 // pred_check
          %p341 = pneg %p69
        $region14: #{tpu_custom_call.1} parent=11 // pred_check_branch
          %343 = sbr.rel (%p341) target = $region16
        $region15: #{tpu_custom_call.1} parent=11 // pred_region
          _
        $region16: #{tpu_custom_call.1} parent=11 // pred_fallthru
          _
        // Predicated region
        $region17: #{tpu_custom_call.1} parent=11 // pred_check
          %p344 = pneg %p90
        $region18: #{tpu_custom_call.1} parent=11 // pred_check_branch
          %346 = sbr.rel (%p344) target = $region20
        $region19: #{tpu_custom_call.1} parent=11 // pred_region
          _
        $region20: #{tpu_custom_call.1} parent=11 // pred_fallthru
          _
        // Predicated region
        $region21: #{tpu_custom_call.1} parent=11 // pred_check
          %p347 = pneg %p111
        $region22: #{tpu_custom_call.1} parent=11 // pred_check_branch
          %349 = sbr.rel (%p347) target = $region24
        $region23: #{tpu_custom_call.1} parent=11 // pred_region
          _
        $region24: #{tpu_custom_call.1} parent=11 // pred_fallthru
          _
        // Predicated region
        $region25: #{tpu_custom_call.1} parent=11 // pred_check
          %p350 = pneg %p132
        $region26: #{tpu_custom_call.1} parent=11 // pred_check_branch
          %352 = sbr.rel (%p350) target = $region28
        $region27: #{tpu_custom_call.1} parent=11 // pred_region
          _
        $region28: #{tpu_custom_call.1} parent=11 // pred_fallthru
          _
        // Predicated region
        $region29: #{tpu_custom_call.1} parent=11 // pred_check
          %p353 = pneg %p153
        $region30: #{tpu_custom_call.1} parent=11 // pred_check_branch
          %355 = sbr.rel (%p353) target = $region32
        $region31: #{tpu_custom_call.1} parent=11 // pred_region
          _
        $region32: #{tpu_custom_call.1} parent=11 // pred_fallthru
          _
        // Predicated region
        $region33: #{tpu_custom_call.1} parent=11 // pred_check
          %p356 = pneg %p174
        $region34: #{tpu_custom_call.1} parent=11 // pred_check_branch
          %358 = sbr.rel (%p356) target = $region36
        $region35: #{tpu_custom_call.1} parent=11 // pred_region
          _
        $region36: #{tpu_custom_call.1} parent=11 // pred_fallthru
          _
        // Predicated region
        $region37: #{tpu_custom_call.1} parent=11 // pred_check
          %p359 = pneg %p195
        $region38: #{tpu_custom_call.1} parent=11 // pred_check_branch
          %361 = sbr.rel (%p359) target = $region40
        $region39: #{tpu_custom_call.1} parent=11 // pred_region
          _
        $region40: #{tpu_custom_call.1} parent=11 // pred_fallthru
          _
        // Predicated region
        $region41: #{tpu_custom_call.1} parent=11 // pred_check
          %p362 = pneg %p216
        $region42: #{tpu_custom_call.1} parent=11 // pred_check_branch
          %364 = sbr.rel (%p362) target = $region44
        $region43: #{tpu_custom_call.1} parent=11 // pred_region
          _
        $region44: #{tpu_custom_call.1} parent=11 // pred_fallthru
          _
        // Predicated region
        $region45: #{tpu_custom_call.1} parent=11 // pred_check
          %p365 = pneg %p237
        $region46: #{tpu_custom_call.1} parent=11 // pred_check_branch
          %367 = sbr.rel (%p365) target = $region48
        $region47: #{tpu_custom_call.1} parent=11 // pred_region
          _
        $region48: #{tpu_custom_call.1} parent=11 // pred_fallthru
          _
        // Predicated region
        $region49: #{tpu_custom_call.1} parent=11 // pred_check
          %p368 = pneg %p258
        $region50: #{tpu_custom_call.1} parent=11 // pred_check_branch
          %370 = sbr.rel (%p368) target = $region52
        $region51: #{tpu_custom_call.1} parent=11 // pred_region
          _
        $region52: #{tpu_custom_call.1} parent=11 // pred_fallthru
          _
        // Predicated region
        $region53: #{tpu_custom_call.1} parent=11 // pred_check
          %p371 = pneg %p279
        $region54: #{tpu_custom_call.1} parent=11 // pred_check_branch
          %373 = sbr.rel (%p371) target = $region56
        $region55: #{tpu_custom_call.1} parent=11 // pred_region
          _
        $region56: #{tpu_custom_call.1} parent=11 // pred_fallthru
          _
        // Predicated region
        $region57: #{tpu_custom_call.1} parent=11 // pred_check
          %p374 = pneg %p300
        $region58: #{tpu_custom_call.1} parent=11 // pred_check_branch
          %376 = sbr.rel (%p374) target = $region60
        $region59: #{tpu_custom_call.1} parent=11 // pred_region
          _
        $region60: #{tpu_custom_call.1} parent=11 // pred_fallthru
          _
      $region12: #{tpu_custom_call.1} parent=5 // pred_fallthru
        _
      %p377 = scmp.lt.s32.totalorder %s22, 2
      // Predicated region
      $region61: #{tpu_custom_call.1} parent=5 // pred_check
        %p378 = pneg %p377
      $region62: #{tpu_custom_call.1} parent=5 // pred_check_branch
        %380 = sbr.rel (%p378) target = $region64
      $region63: #{tpu_custom_call.1} parent=5 // pred_region
        // Predicated region
        $region65: #{tpu_custom_call.1} parent=63 // pred_check
          %p381 = pneg %p42
        $region66: #{tpu_custom_call.1} parent=63 // pred_check_branch
          %383 = sbr.rel (%p381) target = $region68
        $region67: #{tpu_custom_call.1} parent=63 // pred_region
          %p384 = scmp.lt.s32.totalorder %s22, 1
          %s385 = scalar_select %p384, %s22, 1
          %s386 = smul.addr %s385, 8
          %s387 = scalar_lea.vmem %s0, %s386
        $region68: #{tpu_custom_call.1} parent=63 // pred_fallthru
          _
      $region64: #{tpu_custom_call.1} parent=5 // pred_fallthru
        _
      %p388 = scmp.le.s32.totalorder 1, %s22
      %p389 = scmp.lt.s32.totalorder %s22, 3
      %p390 = pnand %p388, %p389
      %p391 = pneg %p390
      // Predicated region
      $region69: #{tpu_custom_call.1} parent=5 // pred_check
        _
      $region70: #{tpu_custom_call.1} parent=5 // pred_check_branch
        %393 = sbr.rel (%p390) target = $region72
      $region71: #{tpu_custom_call.1} parent=5 // pred_region
        %s394 = ssub.s32 %s22, 1
        %p395 = scmp.lt.s32.totalorder %s27, 1
        %s396 = scalar_select %p395, %s27, 1
        %s397 = smul.addr %s396, 8
        %s398 = scalar_lea.vmem %s0, %s397
        %p399 = pneg %p48
        %p400 = pneg %p45
        %p401 = pneg %p69
        %p402 = pneg %p66
        %p403 = pneg %p90
        %p404 = pneg %p87
        %p405 = pneg %p111
        %p406 = pneg %p108
        %p407 = pneg %p132
        %p408 = pneg %p129
        %p409 = pneg %p153
        %p410 = pneg %p150
        %p411 = pneg %p174
        %p412 = pneg %p171
        %p413 = pneg %p195
        %p414 = pneg %p192
        %p415 = pneg %p216
        %p416 = pneg %p213
        %p417 = pneg %p237
        %p418 = pneg %p234
        %p419 = pneg %p258
        %p420 = pneg %p255
        %p421 = pneg %p279
        %p422 = pneg %p276
        %p423 = pneg %p300
        %p424 = pneg %p297
        %p425 = pneg %p326
        %p426 = pneg %p323
        %s427 = sand.u32 %s313, 1
        %s428 = scalar_lea.sflag [#allocation3], %s427
        %s429 = sand.u32 %s313, 1
        %s430 = smul.addr %s429, 8
        %s431 = scalar_lea.vmem [#allocation2], %s430
        %p432 = scmp.lt.s32.totalorder %s27, 1
        %s433 = scalar_select %p432, %s27, 1
        %s434 = smul.addr %s433, 8
        %s435 = scalar_lea.vmem %s0, %s434
        %v437 = vld [vmem:[%s435] sm:$0xff]
        %v438 = vlaneseq
        %v439 = vand.u32 %v438, 127
        %440 = vset.pattern.permute.xlu0 0
        %441 = vperm.xlu0 %440, %v437
        %v442 = vpop.permute.xlu0 %441
        %vm443 = vcmp.eq.s32.totalorder %v439, %v442
        %v444 = vsel %vm443, 1, 0
        %v445 = vcvt.s32.f32 %v444
        %v446 = vpack.c.bf16 %v445, %v445
        %v447 = vld [vmem:[%s1] sm:$0xf]
        %v448 = vld [vmem:[%s1 + $0x4] sm:$0xf]
        %v449 = vld [vmem:[%s1 + $0x8] sm:$0xf]
        %v450 = vld [vmem:[%s1 + $0xc] sm:$0xf]
        %v451 = vld [vmem:[%s1 + $0x10] sm:$0xf]
        %v452 = vld [vmem:[%s1 + $0x14] sm:$0xf]
        %v453 = vld [vmem:[%s1 + $0x18] sm:$0xf]
        %v454 = vld [vmem:[%s1 + $0x1c] sm:$0xf]
        %v455 = vld [vmem:[%s1 + $0x20] sm:$0xf]
        %v456 = vld [vmem:[%s1 + $0x24] sm:$0xf]
        %v457 = vld [vmem:[%s1 + $0x28] sm:$0xf]
        %v458 = vld [vmem:[%s1 + $0x2c] sm:$0xf]
        %v459 = vld [vmem:[%s1 + $0x30] sm:$0xf]
        %v460 = vld [vmem:[%s1 + $0x34] sm:$0xf]
        %v461 = vld [vmem:[%s1 + $0x38] sm:$0xf]
        %v462 = vld [vmem:[%s1 + $0x3c] sm:$0xf]
        %v463 = vld [vmem:[%s2] sm:$0xff]
        %v480 = vunpack.c.l.b16 %v447
        %v481 = vunpack.c.l.b16 %v448
        %v482 = vunpack.c.l.b16 %v449
        %v483 = vunpack.c.l.b16 %v450
        %v484 = vunpack.c.l.b16 %v451
        %v485 = vunpack.c.l.b16 %v452
        %v486 = vunpack.c.l.b16 %v453
        %v487 = vunpack.c.l.b16 %v454
        %v488 = vunpack.c.l.b16 %v455
        %v489 = vunpack.c.l.b16 %v456
        %v490 = vunpack.c.l.b16 %v457
        %v491 = vunpack.c.l.b16 %v458
        %v492 = vunpack.c.l.b16 %v459
        %v493 = vunpack.c.l.b16 %v460
        %v494 = vunpack.c.l.b16 %v461
        %v495 = vunpack.c.l.b16 %v462
        %v496 = vpack.c.b16 %v481, %v480
        %v497 = vpack.c.b16 %v483, %v482
        %v498 = vpack.c.b16 %v485, %v484
        %v499 = vpack.c.b16 %v487, %v486
        %v500 = vpack.c.b16 %v489, %v488
        %v501 = vpack.c.b16 %v491, %v490
        %v502 = vpack.c.b16 %v493, %v492
        %v503 = vpack.c.b16 %v495, %v494
        %512 = vmatpush.bf16.msra.mxu0 %v503
        %513 = vmatpush.bf16.msra.mxu0 %v502
        %514 = vmatpush.bf16.msra.mxu0 %v501
        %515 = vmatpush.bf16.msra.mxu0 %v500
        %516 = vmatpush.bf16.msra.mxu0 %v499
        %517 = vmatpush.bf16.msra.mxu0 %v498
        %518 = vmatpush.bf16.msra.mxu0 %v497
        %519 = vmatpush.bf16.msra.mxu0 %v496
        %520 = vmatmul.bf16.gmra.mxu0 %v446
        %v521 = vpop.f32.mrf.mxu0
        %v522 = vadd.f32 %v463, %v521
        %v523 = vpop.f32.mrf.mxu0
        %524 = vdwg.mxu0
        %v525 = vlaneseq
        %v526 = vshrl.u32 %v525, 7
        %vm527 = vcmp.le.s32.totalorder %v439, %v526
        %v528 = vld [vmem:[%s10] sm:$0xf]
        %v529 = vld [vmem:[%s11] sm:$0x3]
        %vm530 = vcmask 261120
        %v531 = vsel %vm530, %v522, 0.0
        %532 = vadd.xlane.f32.xlu0 %v531
        %v533 = vpop.xlane.xlu0 %532
        %v534 = vrcp.pop 32.0
        %v535 = vmul.f32 32.0, %v534
        %v536 = vsub.f32 1.0, %v535
        %v537 = vmul.f32 %v534, %v536
        %v538 = vadd.f32 %v534, %v537
        %vm539 = vweird.f32 %v534
        %v540 = vsel %vm539, %v534, %v538
        %v541 = vmul.f32 %v533, %v540
        %v542 = vsub.f32 %v522, %v541
        %v543 = vmul.f32 %v542, %v542
        %v544 = vsel %vm530, %v543, 0.0
        %545 = vadd.xlane.f32.xlu0 %v544
        %v546 = vpop.xlane.xlu0 %545
        %v547 = vmul.f32 %v546, %v540
        %v548 = vadd.f32 %v547, 1e-05
        %v549 = vrsqrt.pop %v548
        %v550 = vmul.f32 %v549, %v548
        %v551 = vmul.f32 %v550, %v549
        %v552 = vmul.f32 0.5, %v551
        %v553 = vsub.f32 1.5, %v552
        %v554 = vmul.f32 %v549, %v553
        %vm555 = vweird.f32 %v548
        %vm556 = vweird.f32 %v549
        %vm557 = vmor %vm555, %vm556
        %v558 = vsel %vm557, %v549, %v554
        %v559 = vmul.f32 %v542, %v558
        %v560 = vperm.slane %v528, 0
        %v561 = vmul.f32 %v559, %v560
        %v562 = vperm.slane %v528, 1
        %v563 = vadd.f32 %v561, %v562
        %v564 = vpack.c.bf16 %v563, %v563
        %v565 = vld [vmem:[%s6] sm:$0xf]
        %v566 = vld [vmem:[%s6 + $0x4] sm:$0xf]
        %v567 = vld [vmem:[%s6 + $0x8] sm:$0xf]
        %v568 = vld [vmem:[%s6 + $0xc] sm:$0xf]
        %v573 = vunpack.c.l.b16 %v565
        %v574 = vunpack.c.l.b16 %v566
        %v575 = vunpack.c.l.b16 %v567
        %v576 = vunpack.c.l.b16 %v568
        %v577 = vpack.c.b16 %v574, %v573
        %v578 = vpack.c.b16 %v576, %v575
        %v582 = vsel %vm530, %v564, 0
        %584 = vmatpush.bf16.msra.mxu0 0
        %585 = vmatpush.bf16.msra.mxu0 0
        %586 = vmatpush.bf16.msra.mxu0 0
        %587 = vmatpush.bf16.msra.mxu0 0
        %588 = vmatpush.bf16.msra.mxu0 0
        %589 = vmatpush.bf16.msra.mxu0 0
        %590 = vmatpush.bf16.msra.mxu0 %v578
        %591 = vmatpush.bf16.msra.mxu0 %v577
        %592 = vmatmul.bf16.gmra.mxu0 %v582
        %v593 = vpop.f32.mrf.mxu0
        %v594 = vadd.f32 0.0, %v593
        %v595 = vpop.f32.mrf.mxu0
        %596 = vdwg.mxu0
        %598 = vrot.lane.b32.xlu0 %v594, 104
        %v599 = vpop.permute.xlu0 %598
        %600 = vrot.lane.b32.xlu0 %v594, 80
        %v601 = vpop.permute.xlu0 %600
        %602 = vrot.lane.b32.xlu0 %v594, 56
        %v603 = vpop.permute.xlu0 %602
        %604 = vrot.lane.b32.xlu0 %v594, 120
        %v605 = vpop.permute.xlu0 %604
        %vm606 = vcmask 64512
        %v607 = vsel %vm606, %v594, 0
        %v609 = vsel %vm606, %v605, 0
        %611 = vmatpush.xpose.msra.mxu0 0.0
        %612 = vmatpush.xpose.msra.mxu0 0.0
        %613 = vmatpush.xpose.msra.mxu0 0.0
        %614 = vmatpush.xpose.msra.mxu0 0.0
        %615 = vmatpush.xpose.msra.mxu0 0.0
        %616 = vmatpush.xpose.msra.mxu0 0.0
        %617 = vmatpush.xpose.msra.mxu0 0.0
        %618 = vmatpush.xpose.msra.mxu0 0.0
        %619 = vmatpush.xpose.msra.mxu0 0.0
        %620 = vmatpush.xpose.msra.mxu0 0.0
        %621 = vmatpush.xpose.msra.mxu0 0.0
        %622 = vmatpush.xpose.msra.mxu0 0.0
        %623 = vmatpush.xpose.msra.mxu0 0.0
        %624 = vmatpush.xpose.msra.mxu0 0.0
        %625 = vmatpush.xpose.msra.mxu0 0.0
        %626 = vmatpush.xpose.msra.mxu0 %v609
        %627 = vmatmul.f32.gmra.mxu0 %v607
        %v628 = vpop.f32.mrf.mxu0
        %v629 = vadd.f32 0.0, %v628
        %630 = vdwg.mxu0
        %631 = vrot.lane.b32.xlu0 %v599, 120
        %v632 = vpop.permute.xlu0 %631
        %v633 = vsel %vm606, %v599, 0
        %v635 = vsel %vm606, %v632, 0
        %637 = vmatpush.xpose.msra.mxu0 0.0
        %638 = vmatpush.xpose.msra.mxu0 0.0
        %639 = vmatpush.xpose.msra.mxu0 0.0
        %640 = vmatpush.xpose.msra.mxu0 0.0
        %641 = vmatpush.xpose.msra.mxu0 0.0
        %642 = vmatpush.xpose.msra.mxu0 0.0
        %643 = vmatpush.xpose.msra.mxu0 0.0
        %644 = vmatpush.xpose.msra.mxu0 0.0
        %645 = vmatpush.xpose.msra.mxu0 0.0
        %646 = vmatpush.xpose.msra.mxu0 0.0
        %647 = vmatpush.xpose.msra.mxu0 0.0
        %648 = vmatpush.xpose.msra.mxu0 0.0
        %649 = vmatpush.xpose.msra.mxu0 0.0
        %650 = vmatpush.xpose.msra.mxu0 0.0
        %651 = vmatpush.xpose.msra.mxu0 0.0
        %652 = vmatpush.xpose.msra.mxu0 %v635
        %653 = vmatmul.f32.gmra.mxu0 %v633
        %v654 = vpop.f32.mrf.mxu0
        %v655 = vadd.f32 0.0, %v654
        %656 = vdwg.mxu0
        %657 = vrot.lane.b32.xlu0 %v601, 120
        %v658 = vpop.permute.xlu0 %657
        %v659 = vsel %vm606, %v601, 0
        %v661 = vsel %vm606, %v658, 0
        %663 = vmatpush.xpose.msra.mxu0 0.0
        %664 = vmatpush.xpose.msra.mxu0 0.0
        %665 = vmatpush.xpose.msra.mxu0 0.0
        %666 = vmatpush.xpose.msra.mxu0 0.0
        %667 = vmatpush.xpose.msra.mxu0 0.0
        %668 = vmatpush.xpose.msra.mxu0 0.0
        %669 = vmatpush.xpose.msra.mxu0 0.0
        %670 = vmatpush.xpose.msra.mxu0 0.0
        %671 = vmatpush.xpose.msra.mxu0 0.0
        %672 = vmatpush.xpose.msra.mxu0 0.0
        %673 = vmatpush.xpose.msra.mxu0 0.0
        %674 = vmatpush.xpose.msra.mxu0 0.0
        %675 = vmatpush.xpose.msra.mxu0 0.0
        %676 = vmatpush.xpose.msra.mxu0 0.0
        %677 = vmatpush.xpose.msra.mxu0 0.0
        %678 = vmatpush.xpose.msra.mxu0 %v661
        %679 = vmatmul.f32.gmra.mxu0 %v659
        %v680 = vpop.f32.mrf.mxu0
        %v681 = vadd.f32 0.0, %v680
        %682 = vdwg.mxu0
        %683 = vrot.lane.b32.xlu0 %v603, 120
        %v684 = vpop.permute.xlu0 %683
        %v685 = vsel %vm606, %v603, 0
        %v687 = vsel %vm606, %v684, 0
        %689 = vmatpush.xpose.msra.mxu0 0.0
        %690 = vmatpush.xpose.msra.mxu0 0.0
        %691 = vmatpush.xpose.msra.mxu0 0.0
        %692 = vmatpush.xpose.msra.mxu0 0.0
        %693 = vmatpush.xpose.msra.mxu0 0.0
        %694 = vmatpush.xpose.msra.mxu0 0.0
        %695 = vmatpush.xpose.msra.mxu0 0.0
        %696 = vmatpush.xpose.msra.mxu0 0.0
        %697 = vmatpush.xpose.msra.mxu0 0.0
        %698 = vmatpush.xpose.msra.mxu0 0.0
        %699 = vmatpush.xpose.msra.mxu0 0.0
        %700 = vmatpush.xpose.msra.mxu0 0.0
        %701 = vmatpush.xpose.msra.mxu0 0.0
        %702 = vmatpush.xpose.msra.mxu0 0.0
        %703 = vmatpush.xpose.msra.mxu0 0.0
        %704 = vmatpush.xpose.msra.mxu0 %v687
        %705 = vmatmul.f32.gmra.mxu0 %v685
        %v706 = vpop.f32.mrf.mxu0
        %v707 = vadd.f32 0.0, %v706
        %708 = vdwg.mxu0
        %v709 = vsel %vm527, 1, 0
        %vm710 = vcmp.eq.s32.totalorder %v709, 1
        %v711 = vsel %vm710, %v629, -1e+30
        %v712 = vsel %vm710, %v655, -1e+30
        %v713 = vsel %vm710, %v681, -1e+30
        %v714 = vsel %vm710, %v707, -1e+30
        %v715 = vsel %vm606, %v711, -inf
        %716 = vmax.xlane.f32.xlu0 %v715
        %v717 = vpop.xlane.xlu0 %716
        %v718 = vsel %vm606, %v712, -inf
        %719 = vmax.xlane.f32.xlu0 %v718
        %v720 = vpop.xlane.xlu0 %719
        %v721 = vsel %vm606, %v713, -inf
        %722 = vmax.xlane.f32.xlu0 %v721
        %v723 = vpop.xlane.xlu0 %722
        %v724 = vsel %vm606, %v714, -inf
        %725 = vmax.xlane.f32.xlu0 %v724
        %v726 = vpop.xlane.xlu0 %725
        %v727 = vsub.f32 %v711, %v717
        %v728 = vsub.f32 %v712, %v720
        %v729 = vsub.f32 %v713, %v723
        %v730 = vsub.f32 %v714, %v726
        %v731 = vmul.f32 %v727, 1.442695
        %v732 = vpow.pop %v731
        %v733 = vmul.f32 %v728, 1.442695
        %v734 = vpow.pop %v733
        %v735 = vmul.f32 %v729, 1.442695
        %v736 = vpow.pop %v735
        %v737 = vmul.f32 %v730, 1.442695
        %v738 = vpow.pop %v737
        %v739 = vsel %vm606, %v732, 0.0
        %740 = vadd.xlane.f32.xlu0 %v739
        %v741 = vpop.xlane.xlu0 %740
        %v742 = vsel %vm606, %v734, 0.0
        %743 = vadd.xlane.f32.xlu0 %v742
        %v744 = vpop.xlane.xlu0 %743
        %v745 = vsel %vm606, %v736, 0.0
        %746 = vadd.xlane.f32.xlu0 %v745
        %v747 = vpop.xlane.xlu0 %746
        %v748 = vsel %vm606, %v738, 0.0
        %749 = vadd.xlane.f32.xlu0 %v748
        %v750 = vpop.xlane.xlu0 %749
        %v751 = vrcp.pop %v741
        %v752 = vrcp.pop %v744
        %v753 = vrcp.pop %v747
        %v754 = vrcp.pop %v750
        %v755 = vmul.f32 %v732, %v751
        %v756 = vmul.f32 %v734, %v752
        %v757 = vmul.f32 %v736, %v753
        %v758 = vmul.f32 %v738, %v754
        %759 = vrot.lane.b32.xlu0 %v594, 112
        %v760 = vpop.permute.xlu0 %759
        %v763 = vsel %vm606, %v755, 0
        %765 = vmatpush.msra.mxu0 0.0
        %766 = vmatpush.msra.mxu0 0.0
        %767 = vmatpush.msra.mxu0 0.0
        %768 = vmatpush.msra.mxu0 0.0
        %769 = vmatpush.msra.mxu0 0.0
        %770 = vmatpush.msra.mxu0 0.0
        %771 = vmatpush.msra.mxu0 0.0
        %772 = vmatpush.msra.mxu0 0.0
        %773 = vmatpush.msra.mxu0 0.0
        %774 = vmatpush.msra.mxu0 0.0
        %775 = vmatpush.msra.mxu0 0.0
        %776 = vmatpush.msra.mxu0 0.0
        %777 = vmatpush.msra.mxu0 0.0
        %778 = vmatpush.msra.mxu0 0.0
        %779 = vmatpush.msra.mxu0 0.0
        %780 = vmatpush.msra.mxu0 %v760
        %781 = vmatmul.f32.gmra.mxu0 %v763
        %v782 = vpop.f32.mrf.mxu0
        %v783 = vadd.f32 0.0, %v782
        %784 = vdwg.mxu0
        %785 = vrot.lane.b32.xlu0 %v599, 112
        %v786 = vpop.permute.xlu0 %785
        %v789 = vsel %vm606, %v756, 0
        %791 = vmatpush.msra.mxu0 0.0
        %792 = vmatpush.msra.mxu0 0.0
        %793 = vmatpush.msra.mxu0 0.0
        %794 = vmatpush.msra.mxu0 0.0
        %795 = vmatpush.msra.mxu0 0.0
        %796 = vmatpush.msra.mxu0 0.0
        %797 = vmatpush.msra.mxu0 0.0
        %798 = vmatpush.msra.mxu0 0.0
        %799 = vmatpush.msra.mxu0 0.0
        %800 = vmatpush.msra.mxu0 0.0
        %801 = vmatpush.msra.mxu0 0.0
        %802 = vmatpush.msra.mxu0 0.0
        %803 = vmatpush.msra.mxu0 0.0
        %804 = vmatpush.msra.mxu0 0.0
        %805 = vmatpush.msra.mxu0 0.0
        %806 = vmatpush.msra.mxu0 %v786
        %807 = vmatmul.f32.gmra.mxu0 %v789
        %v808 = vpop.f32.mrf.mxu0
        %v809 = vadd.f32 0.0, %v808
        %810 = vdwg.mxu0
        %811 = vrot.lane.b32.xlu0 %v601, 112
        %v812 = vpop.permute.xlu0 %811
        %v815 = vsel %vm606, %v757, 0
        %817 = vmatpush.msra.mxu0 0.0
        %818 = vmatpush.msra.mxu0 0.0
        %819 = vmatpush.msra.mxu0 0.0
        %820 = vmatpush.msra.mxu0 0.0
        %821 = vmatpush.msra.mxu0 0.0
        %822 = vmatpush.msra.mxu0 0.0
        %823 = vmatpush.msra.mxu0 0.0
        %824 = vmatpush.msra.mxu0 0.0
        %825 = vmatpush.msra.mxu0 0.0
        %826 = vmatpush.msra.mxu0 0.0
        %827 = vmatpush.msra.mxu0 0.0
        %828 = vmatpush.msra.mxu0 0.0
        %829 = vmatpush.msra.mxu0 0.0
        %830 = vmatpush.msra.mxu0 0.0
        %831 = vmatpush.msra.mxu0 0.0
        %832 = vmatpush.msra.mxu0 %v812
        %833 = vmatmul.f32.gmra.mxu0 %v815
        %v834 = vpop.f32.mrf.mxu0
        %v835 = vadd.f32 0.0, %v834
        %836 = vdwg.mxu0
        %837 = vrot.lane.b32.xlu0 %v603, 112
        %v838 = vpop.permute.xlu0 %837
        %v841 = vsel %vm606, %v758, 0
        %843 = vmatpush.msra.mxu0 0.0
        %844 = vmatpush.msra.mxu0 0.0
        %845 = vmatpush.msra.mxu0 0.0
        %846 = vmatpush.msra.mxu0 0.0
        %847 = vmatpush.msra.mxu0 0.0
        %848 = vmatpush.msra.mxu0 0.0
        %849 = vmatpush.msra.mxu0 0.0
        %850 = vmatpush.msra.mxu0 0.0
        %851 = vmatpush.msra.mxu0 0.0
        %852 = vmatpush.msra.mxu0 0.0
        %853 = vmatpush.msra.mxu0 0.0
        %854 = vmatpush.msra.mxu0 0.0
        %855 = vmatpush.msra.mxu0 0.0
        %856 = vmatpush.msra.mxu0 0.0
        %857 = vmatpush.msra.mxu0 0.0
        %858 = vmatpush.msra.mxu0 %v838
        %859 = vmatmul.f32.gmra.mxu0 %v841
        %v860 = vpop.f32.mrf.mxu0
        %v861 = vadd.f32 0.0, %v860
        %862 = vdwg.mxu0
        %v863 = vpack.c.bf16 %v783, %v783
        %v864 = vpack.c.bf16 %v809, %v809
        %v865 = vpack.c.bf16 %v835, %v835
        %v866 = vpack.c.bf16 %v861, %v861
        %v867 = vld [vmem:[%s7] sm:$0xf]
        %v868 = vld [vmem:[%s7 + $0x4] sm:$0xf]
        %v869 = vld [vmem:[%s7 + $0x8] sm:$0xf]
        %v870 = vld [vmem:[%s7 + $0xc] sm:$0xf]
        %v872 = vsel %vm606, %v863, 0
        %vm874 = vcmask 1043456
        %v876 = vsel %vm874, %v867, 0
        %878 = vmatpush.bf16.msra.mxu0 0
        %879 = vmatpush.bf16.msra.mxu0 0
        %880 = vmatpush.bf16.msra.mxu0 0
        %881 = vmatpush.bf16.msra.mxu0 0
        %882 = vmatpush.bf16.msra.mxu0 0
        %883 = vmatpush.bf16.msra.mxu0 0
        %884 = vmatpush.bf16.msra.mxu0 0
        %885 = vmatpush.bf16.msra.mxu0 %v876
        %886 = vmatmul.bf16.gmra.mxu0 %v872
        %v887 = vpop.f32.mrf.mxu0
        %v888 = vadd.f32 0.0, %v887
        %v889 = vpop.f32.mrf.mxu0
        %890 = vdwg.mxu0
        %v892 = vsel %vm606, %v864, 0
        %v895 = vsel %vm874, %v868, 0
        %897 = vmatpush.bf16.msra.mxu0 0
        %898 = vmatpush.bf16.msra.mxu0 0
        %899 = vmatpush.bf16.msra.mxu0 0
        %900 = vmatpush.bf16.msra.mxu0 0
        %901 = vmatpush.bf16.msra.mxu0 0
        %902 = vmatpush.bf16.msra.mxu0 0
        %903 = vmatpush.bf16.msra.mxu0 0
        %904 = vmatpush.bf16.msra.mxu0 %v895
        %905 = vmatmul.bf16.gmra.mxu0 %v892
        %v906 = vpop.f32.mrf.mxu0
        %v907 = vadd.f32 0.0, %v906
        %v908 = vpop.f32.mrf.mxu0
        %909 = vdwg.mxu0
        %v911 = vsel %vm606, %v865, 0
        %v914 = vsel %vm874, %v869, 0
        %916 = vmatpush.bf16.msra.mxu0 0
        %917 = vmatpush.bf16.msra.mxu0 0
        %918 = vmatpush.bf16.msra.mxu0 0
        %919 = vmatpush.bf16.msra.mxu0 0
        %920 = vmatpush.bf16.msra.mxu0 0
        %921 = vmatpush.bf16.msra.mxu0 0
        %922 = vmatpush.bf16.msra.mxu0 0
        %923 = vmatpush.bf16.msra.mxu0 %v914
        %924 = vmatmul.bf16.gmra.mxu0 %v911
        %v925 = vpop.f32.mrf.mxu0
        %v926 = vadd.f32 0.0, %v925
        %v927 = vpop.f32.mrf.mxu0
        %928 = vdwg.mxu0
        %v930 = vsel %vm606, %v866, 0
        %v933 = vsel %vm874, %v870, 0
        %935 = vmatpush.bf16.msra.mxu0 0
        %936 = vmatpush.bf16.msra.mxu0 0
        %937 = vmatpush.bf16.msra.mxu0 0
        %938 = vmatpush.bf16.msra.mxu0 0
        %939 = vmatpush.bf16.msra.mxu0 0
        %940 = vmatpush.bf16.msra.mxu0 0
        %941 = vmatpush.bf16.msra.mxu0 0
        %942 = vmatpush.bf16.msra.mxu0 %v933
        %943 = vmatmul.bf16.gmra.mxu0 %v930
        %v944 = vpop.f32.mrf.mxu0
        %v945 = vadd.f32 0.0, %v944
        %v946 = vpop.f32.mrf.mxu0
        %947 = vdwg.mxu0
        %v948 = vsel %vm530, %v888, 0.0
        %v949 = vsel %vm530, %v907, 0.0
        %v950 = vadd.f32 %v948, %v949
        %v951 = vsel %vm530, %v926, 0.0
        %v952 = vadd.f32 %v950, %v951
        %v953 = vsel %vm530, %v945, 0.0
        %v954 = vadd.f32 %v952, %v953
        %v955 = vperm.slane %v529, 0
        %v956 = vadd.f32 %v954, %v955
        %v957 = vadd.f32 %v522, %v956
        %v958 = vsel %vm530, %v957, 0.0
        %959 = vadd.xlane.f32.xlu0 %v958
        %v960 = vpop.xlane.xlu0 %959
        %v961 = vmul.f32 %v960, %v540
        %v962 = vsub.f32 %v957, %v961
        %v963 = vmul.f32 %v962, %v962
        %v964 = vsel %vm530, %v963, 0.0
        %965 = vadd.xlane.f32.xlu0 %v964
        %v966 = vpop.xlane.xlu0 %965
        %v967 = vmul.f32 %v966, %v540
        %v968 = vadd.f32 %v967, 1e-05
        %v969 = vrsqrt.pop %v968
        %v970 = vmul.f32 %v969, %v968
        %v971 = vmul.f32 %v970, %v969
        %v972 = vmul.f32 0.5, %v971
        %v973 = vsub.f32 1.5, %v972
        %v974 = vmul.f32 %v969, %v973
        %vm975 = vweird.f32 %v968
        %vm976 = vweird.f32 %v969
        %vm977 = vmor %vm975, %vm976
        %v978 = vsel %vm977, %v969, %v974
        %v979 = vmul.f32 %v962, %v978
        %v980 = vperm.slane %v528, 2
        %v981 = vmul.f32 %v979, %v980
        %v982 = vperm.slane %v528, 3
        %v983 = vadd.f32 %v981, %v982
        %v984 = vpack.c.bf16 %v983, %v983
        %v985 = vld [vmem:[%s8] sm:$0xf]
        %v986 = vld [vmem:[%s8 + $0x4] sm:$0xf]
        %v987 = vld [vmem:[%s8 + $0x8] sm:$0xf]
        %v988 = vld [vmem:[%s8 + $0xc] sm:$0xf]
        %v989 = vld [vmem:[%s12] sm:$0x1]
        %v991 = vperm.slane %v989, 0
        %v997 = vunpack.c.l.b16 %v985
        %v998 = vunpack.c.l.b16 %v986
        %v999 = vunpack.c.l.b16 %v987
        %v1000 = vunpack.c.l.b16 %v988
        %v1001 = vpack.c.b16 %v998, %v997
        %v1002 = vpack.c.b16 %v1000, %v999
        %v1006 = vsel %vm530, %v984, 0
        %1008 = vmatpush.bf16.msra.mxu0 0
        %1009 = vmatpush.bf16.msra.mxu0 0
        %1010 = vmatpush.bf16.msra.mxu0 0
        %1011 = vmatpush.bf16.msra.mxu0 0
        %1012 = vmatpush.bf16.msra.mxu0 0
        %1013 = vmatpush.bf16.msra.mxu0 0
        %1014 = vmatpush.bf16.msra.mxu0 %v1002
        %1015 = vmatpush.bf16.msra.mxu0 %v1001
        %1016 = vmatmul.bf16.gmra.mxu0 %v1006
        %v1017 = vpop.f32.mrf.mxu0
        %v1018 = vadd.f32 %v991, %v1017
        %v1019 = vpop.f32.mrf.mxu0
        %1020 = vdwg.mxu0
        %v1021 = vmax.f32 %v1018, 0.0
        %v1022 = vpack.c.bf16 %v1021, %v1021
        %v1023 = vld [vmem:[%s9] sm:$0xf]
        %v1024 = vld [vmem:[%s9 + $0x4] sm:$0xf]
        %v1025 = vld [vmem:[%s9 + $0x8] sm:$0xf]
        %v1026 = vld [vmem:[%s9 + $0xc] sm:$0xf]
        %v1027 = vld [vmem:[%s9 + $0x10] sm:$0xf]
        %v1028 = vld [vmem:[%s9 + $0x14] sm:$0xf]
        %v1029 = vld [vmem:[%s9 + $0x18] sm:$0xf]
        %v1030 = vld [vmem:[%s9 + $0x1c] sm:$0xf]
        %v1031 = vld [vmem:[%s9 + $0x20] sm:$0xf]
        %v1032 = vld [vmem:[%s9 + $0x24] sm:$0xf]
        %v1033 = vld [vmem:[%s9 + $0x28] sm:$0xf]
        %v1034 = vld [vmem:[%s9 + $0x2c] sm:$0xf]
        %v1035 = vld [vmem:[%s9 + $0x30] sm:$0xf]
        %v1036 = vld [vmem:[%s9 + $0x34] sm:$0xf]
        %v1037 = vld [vmem:[%s9 + $0x38] sm:$0xf]
        %v1038 = vld [vmem:[%s9 + $0x3c] sm:$0xf]
        %v1039 = vperm.slane %v529, 1
        %v1056 = vunpack.c.l.b16 %v1023
        %v1057 = vunpack.c.l.b16 %v1024
        %v1058 = vunpack.c.l.b16 %v1025
        %v1059 = vunpack.c.l.b16 %v1026
        %v1060 = vunpack.c.l.b16 %v1027
        %v1061 = vunpack.c.l.b16 %v1028
        %v1062 = vunpack.c.l.b16 %v1029
        %v1063 = vunpack.c.l.b16 %v1030
        %v1064 = vunpack.c.l.b16 %v1031
        %v1065 = vunpack.c.l.b16 %v1032
        %v1066 = vunpack.c.l.b16 %v1033
        %v1067 = vunpack.c.l.b16 %v1034
        %v1068 = vunpack.c.l.b16 %v1035
        %v1069 = vunpack.c.l.b16 %v1036
        %v1070 = vunpack.c.l.b16 %v1037
        %v1071 = vunpack.c.l.b16 %v1038
        %v1072 = vpack.c.b16 %v1057, %v1056
        %v1073 = vpack.c.b16 %v1059, %v1058
        %v1074 = vpack.c.b16 %v1061, %v1060
        %v1075 = vpack.c.b16 %v1063, %v1062
        %v1076 = vpack.c.b16 %v1065, %v1064
        %v1077 = vpack.c.b16 %v1067, %v1066
        %v1078 = vpack.c.b16 %v1069, %v1068
        %v1079 = vpack.c.b16 %v1071, %v1070
        %1088 = vmatpush.bf16.msra.mxu0 %v1079
        %1089 = vmatpush.bf16.msra.mxu0 %v1078
        %1090 = vmatpush.bf16.msra.mxu0 %v1077
        %1091 = vmatpush.bf16.msra.mxu0 %v1076
        %1092 = vmatpush.bf16.msra.mxu0 %v1075
        %1093 = vmatpush.bf16.msra.mxu0 %v1074
        %1094 = vmatpush.bf16.msra.mxu0 %v1073
        %1095 = vmatpush.bf16.msra.mxu0 %v1072
        %1096 = vmatmul.bf16.gmra.mxu0 %v1022
        %v1097 = vpop.f32.mrf.mxu0
        %v1098 = vadd.f32 %v1039, %v1097
        %v1099 = vpop.f32.mrf.mxu0
        %1100 = vdwg.mxu0
        %v1101 = vadd.f32 %v957, %v1098
        %s1102 = scalar_lea.vmem %s10, 4
        %v1103 = vld [vmem:[%s1102] sm:$0xf]
        %s1104 = scalar_lea.vmem %s11, 2
        %v1105 = vld [vmem:[%s1104] sm:$0x3]
        %v1106 = vsel %vm530, %v1101, 0.0
        %1107 = vadd.xlane.f32.xlu0 %v1106
        %v1108 = vpop.xlane.xlu0 %1107
        %v1109 = vmul.f32 %v1108, %v540
        %v1110 = vsub.f32 %v1101, %v1109
        %v1111 = vmul.f32 %v1110, %v1110
        %v1112 = vsel %vm530, %v1111, 0.0
        %1113 = vadd.xlane.f32.xlu0 %v1112
        %v1114 = vpop.xlane.xlu0 %1113
        %v1115 = vmul.f32 %v1114, %v540
        %v1116 = vadd.f32 %v1115, 1e-05
        %v1117 = vrsqrt.pop %v1116
        %v1118 = vmul.f32 %v1117, %v1116
        %v1119 = vmul.f32 %v1118, %v1117
        %v1120 = vmul.f32 0.5, %v1119
        %v1121 = vsub.f32 1.5, %v1120
        %v1122 = vmul.f32 %v1117, %v1121
        %vm1123 = vweird.f32 %v1116
        %vm1124 = vweird.f32 %v1117
        %vm1125 = vmor %vm1123, %vm1124
        %v1126 = vsel %vm1125, %v1117, %v1122
        %v1127 = vmul.f32 %v1110, %v1126
        %v1128 = vperm.slane %v1103, 0
        %v1129 = vmul.f32 %v1127, %v1128
        %v1130 = vperm.slane %v1103, 1
        %v1131 = vadd.f32 %v1129, %v1130
        %v1132 = vpack.c.bf16 %v1131, %v1131
        %s1133 = scalar_lea.vmem %s6, 16
        %v1134 = vld [vmem:[%s1133] sm:$0xf]
        %v1135 = vld [vmem:[%s1133 + $0x4] sm:$0xf]
        %v1136 = vld [vmem:[%s1133 + $0x8] sm:$0xf]
        %v1137 = vld [vmem:[%s1133 + $0xc] sm:$0xf]
        %v1142 = vunpack.c.l.b16 %v1134
        %v1143 = vunpack.c.l.b16 %v1135
        %v1144 = vunpack.c.l.b16 %v1136
        %v1145 = vunpack.c.l.b16 %v1137
        %v1146 = vpack.c.b16 %v1143, %v1142
        %v1147 = vpack.c.b16 %v1145, %v1144
        %v1151 = vsel %vm530, %v1132, 0
        %1153 = vmatpush.bf16.msra.mxu0 0
        %1154 = vmatpush.bf16.msra.mxu0 0
        %1155 = vmatpush.bf16.msra.mxu0 0
        %1156 = vmatpush.bf16.msra.mxu0 0
        %1157 = vmatpush.bf16.msra.mxu0 0
        %1158 = vmatpush.bf16.msra.mxu0 0
        %1159 = vmatpush.bf16.msra.mxu0 %v1147
        %1160 = vmatpush.bf16.msra.mxu0 %v1146
        %1161 = vmatmul.bf16.gmra.mxu0 %v1151
        %v1162 = vpop.f32.mrf.mxu0
        %v1163 = vadd.f32 0.0, %v1162
        %v1164 = vpop.f32.mrf.mxu0
        %1165 = vdwg.mxu0
        %1167 = vrot.lane.b32.xlu0 %v1163, 104
        %v1168 = vpop.permute.xlu0 %1167
        %1169 = vrot.lane.b32.xlu0 %v1163, 80
        %v1170 = vpop.permute.xlu0 %1169
        %1171 = vrot.lane.b32.xlu0 %v1163, 56
        %v1172 = vpop.permute.xlu0 %1171
        %1173 = vrot.lane.b32.xlu0 %v1163, 120
        %v1174 = vpop.permute.xlu0 %1173
        %v1175 = vsel %vm606, %v1163, 0
        %v1177 = vsel %vm606, %v1174, 0
        %1179 = vmatpush.xpose.msra.mxu0 0.0
        %1180 = vmatpush.xpose.msra.mxu0 0.0
        %1181 = vmatpush.xpose.msra.mxu0 0.0
        %1182 = vmatpush.xpose.msra.mxu0 0.0
        %1183 = vmatpush.xpose.msra.mxu0 0.0
        %1184 = vmatpush.xpose.msra.mxu0 0.0
        %1185 = vmatpush.xpose.msra.mxu0 0.0
        %1186 = vmatpush.xpose.msra.mxu0 0.0
        %1187 = vmatpush.xpose.msra.mxu0 0.0
        %1188 = vmatpush.xpose.msra.mxu0 0.0
        %1189 = vmatpush.xpose.msra.mxu0 0.0
        %1190 = vmatpush.xpose.msra.mxu0 0.0
        %1191 = vmatpush.xpose.msra.mxu0 0.0
        %1192 = vmatpush.xpose.msra.mxu0 0.0
        %1193 = vmatpush.xpose.msra.mxu0 0.0
        %1194 = vmatpush.xpose.msra.mxu0 %v1177
        %1195 = vmatmul.f32.gmra.mxu0 %v1175
        %v1196 = vpop.f32.mrf.mxu0
        %v1197 = vadd.f32 0.0, %v1196
        %1198 = vdwg.mxu0
        %1199 = vrot.lane.b32.xlu0 %v1168, 120
        %v1200 = vpop.permute.xlu0 %1199
        %v1201 = vsel %vm606, %v1168, 0
        %v1203 = vsel %vm606, %v1200, 0
        %1205 = vmatpush.xpose.msra.mxu0 0.0
        %1206 = vmatpush.xpose.msra.mxu0 0.0
        %1207 = vmatpush.xpose.msra.mxu0 0.0
        %1208 = vmatpush.xpose.msra.mxu0 0.0
        %1209 = vmatpush.xpose.msra.mxu0 0.0
        %1210 = vmatpush.xpose.msra.mxu0 0.0
        %1211 = vmatpush.xpose.msra.mxu0 0.0
        %1212 = vmatpush.xpose.msra.mxu0 0.0
        %1213 = vmatpush.xpose.msra.mxu0 0.0
        %1214 = vmatpush.xpose.msra.mxu0 0.0
        %1215 = vmatpush.xpose.msra.mxu0 0.0
        %1216 = vmatpush.xpose.msra.mxu0 0.0
        %1217 = vmatpush.xpose.msra.mxu0 0.0
        %1218 = vmatpush.xpose.msra.mxu0 0.0
        %1219 = vmatpush.xpose.msra.mxu0 0.0
        %1220 = vmatpush.xpose.msra.mxu0 %v1203
        %1221 = vmatmul.f32.gmra.mxu0 %v1201
        %v1222 = vpop.f32.mrf.mxu0
        %v1223 = vadd.f32 0.0, %v1222
        %1224 = vdwg.mxu0
        %1225 = vrot.lane.b32.xlu0 %v1170, 120
        %v1226 = vpop.permute.xlu0 %1225
        %v1227 = vsel %vm606, %v1170, 0
        %v1229 = vsel %vm606, %v1226, 0
        %1231 = vmatpush.xpose.msra.mxu0 0.0
        %1232 = vmatpush.xpose.msra.mxu0 0.0
        %1233 = vmatpush.xpose.msra.mxu0 0.0
        %1234 = vmatpush.xpose.msra.mxu0 0.0
        %1235 = vmatpush.xpose.msra.mxu0 0.0
        %1236 = vmatpush.xpose.msra.mxu0 0.0
        %1237 = vmatpush.xpose.msra.mxu0 0.0
        %1238 = vmatpush.xpose.msra.mxu0 0.0
        %1239 = vmatpush.xpose.msra.mxu0 0.0
        %1240 = vmatpush.xpose.msra.mxu0 0.0
        %1241 = vmatpush.xpose.msra.mxu0 0.0
        %1242 = vmatpush.xpose.msra.mxu0 0.0
        %1243 = vmatpush.xpose.msra.mxu0 0.0
        %1244 = vmatpush.xpose.msra.mxu0 0.0
        %1245 = vmatpush.xpose.msra.mxu0 0.0
        %1246 = vmatpush.xpose.msra.mxu0 %v1229
        %1247 = vmatmul.f32.gmra.mxu0 %v1227
        %v1248 = vpop.f32.mrf.mxu0
        %v1249 = vadd.f32 0.0, %v1248
        %1250 = vdwg.mxu0
        %1251 = vrot.lane.b32.xlu0 %v1172, 120
        %v1252 = vpop.permute.xlu0 %1251
        %v1253 = vsel %vm606, %v1172, 0
        %v1255 = vsel %vm606, %v1252, 0
        %1257 = vmatpush.xpose.msra.mxu0 0.0
        %1258 = vmatpush.xpose.msra.mxu0 0.0
        %1259 = vmatpush.xpose.msra.mxu0 0.0
        %1260 = vmatpush.xpose.msra.mxu0 0.0
        %1261 = vmatpush.xpose.msra.mxu0 0.0
        %1262 = vmatpush.xpose.msra.mxu0 0.0
        %1263 = vmatpush.xpose.msra.mxu0 0.0
        %1264 = vmatpush.xpose.msra.mxu0 0.0
        %1265 = vmatpush.xpose.msra.mxu0 0.0
        %1266 = vmatpush.xpose.msra.mxu0 0.0
        %1267 = vmatpush.xpose.msra.mxu0 0.0
        %1268 = vmatpush.xpose.msra.mxu0 0.0
        %1269 = vmatpush.xpose.msra.mxu0 0.0
        %1270 = vmatpush.xpose.msra.mxu0 0.0
        %1271 = vmatpush.xpose.msra.mxu0 0.0
        %1272 = vmatpush.xpose.msra.mxu0 %v1255
        %1273 = vmatmul.f32.gmra.mxu0 %v1253
        %v1274 = vpop.f32.mrf.mxu0
        %v1275 = vadd.f32 0.0, %v1274
        %1276 = vdwg.mxu0
        %v1277 = vsel %vm710, %v1197, -1e+30
        %v1278 = vsel %vm710, %v1223, -1e+30
        %v1279 = vsel %vm710, %v1249, -1e+30
        %v1280 = vsel %vm710, %v1275, -1e+30
        %v1281 = vsel %vm606, %v1277, -inf
        %1282 = vmax.xlane.f32.xlu0 %v1281
        %v1283 = vpop.xlane.xlu0 %1282
        %v1284 = vsel %vm606, %v1278, -inf
        %1285 = vmax.xlane.f32.xlu0 %v1284
        %v1286 = vpop.xlane.xlu0 %1285
        %v1287 = vsel %vm606, %v1279, -inf
        %1288 = vmax.xlane.f32.xlu0 %v1287
        %v1289 = vpop.xlane.xlu0 %1288
        %v1290 = vsel %vm606, %v1280, -inf
        %1291 = vmax.xlane.f32.xlu0 %v1290
        %v1292 = vpop.xlane.xlu0 %1291
        %v1293 = vsub.f32 %v1277, %v1283
        %v1294 = vsub.f32 %v1278, %v1286
        %v1295 = vsub.f32 %v1279, %v1289
        %v1296 = vsub.f32 %v1280, %v1292
        %v1297 = vmul.f32 %v1293, 1.442695
        %v1298 = vpow.pop %v1297
        %v1299 = vmul.f32 %v1294, 1.442695
        %v1300 = vpow.pop %v1299
        %v1301 = vmul.f32 %v1295, 1.442695
        %v1302 = vpow.pop %v1301
        %v1303 = vmul.f32 %v1296, 1.442695
        %v1304 = vpow.pop %v1303
        %v1305 = vsel %vm606, %v1298, 0.0
        %1306 = vadd.xlane.f32.xlu0 %v1305
        %v1307 = vpop.xlane.xlu0 %1306
        %v1308 = vsel %vm606, %v1300, 0.0
        %1309 = vadd.xlane.f32.xlu0 %v1308
        %v1310 = vpop.xlane.xlu0 %1309
        %v1311 = vsel %vm606, %v1302, 0.0
        %1312 = vadd.xlane.f32.xlu0 %v1311
        %v1313 = vpop.xlane.xlu0 %1312
        %v1314 = vsel %vm606, %v1304, 0.0
        %1315 = vadd.xlane.f32.xlu0 %v1314
        %v1316 = vpop.xlane.xlu0 %1315
        %v1317 = vrcp.pop %v1307
        %v1318 = vrcp.pop %v1310
        %v1319 = vrcp.pop %v1313
        %v1320 = vrcp.pop %v1316
        %v1321 = vmul.f32 %v1298, %v1317
        %v1322 = vmul.f32 %v1300, %v1318
        %v1323 = vmul.f32 %v1302, %v1319
        %v1324 = vmul.f32 %v1304, %v1320
        %1325 = vrot.lane.b32.xlu0 %v1163, 112
        %v1326 = vpop.permute.xlu0 %1325
        %v1329 = vsel %vm606, %v1321, 0
        %1331 = vmatpush.msra.mxu0 0.0
        %1332 = vmatpush.msra.mxu0 0.0
        %1333 = vmatpush.msra.mxu0 0.0
        %1334 = vmatpush.msra.mxu0 0.0
        %1335 = vmatpush.msra.mxu0 0.0
        %1336 = vmatpush.msra.mxu0 0.0
        %1337 = vmatpush.msra.mxu0 0.0
        %1338 = vmatpush.msra.mxu0 0.0
        %1339 = vmatpush.msra.mxu0 0.0
        %1340 = vmatpush.msra.mxu0 0.0
        %1341 = vmatpush.msra.mxu0 0.0
        %1342 = vmatpush.msra.mxu0 0.0
        %1343 = vmatpush.msra.mxu0 0.0
        %1344 = vmatpush.msra.mxu0 0.0
        %1345 = vmatpush.msra.mxu0 0.0
        %1346 = vmatpush.msra.mxu0 %v1326
        %1347 = vmatmul.f32.gmra.mxu0 %v1329
        %v1348 = vpop.f32.mrf.mxu0
        %v1349 = vadd.f32 0.0, %v1348
        %1350 = vdwg.mxu0
        %1351 = vrot.lane.b32.xlu0 %v1168, 112
        %v1352 = vpop.permute.xlu0 %1351
        %v1355 = vsel %vm606, %v1322, 0
        %1357 = vmatpush.msra.mxu0 0.0
        %1358 = vmatpush.msra.mxu0 0.0
        %1359 = vmatpush.msra.mxu0 0.0
        %1360 = vmatpush.msra.mxu0 0.0
        %1361 = vmatpush.msra.mxu0 0.0
        %1362 = vmatpush.msra.mxu0 0.0
        %1363 = vmatpush.msra.mxu0 0.0
        %1364 = vmatpush.msra.mxu0 0.0
        %1365 = vmatpush.msra.mxu0 0.0
        %1366 = vmatpush.msra.mxu0 0.0
        %1367 = vmatpush.msra.mxu0 0.0
        %1368 = vmatpush.msra.mxu0 0.0
        %1369 = vmatpush.msra.mxu0 0.0
        %1370 = vmatpush.msra.mxu0 0.0
        %1371 = vmatpush.msra.mxu0 0.0
        %1372 = vmatpush.msra.mxu0 %v1352
        %1373 = vmatmul.f32.gmra.mxu0 %v1355
        %v1374 = vpop.f32.mrf.mxu0
        %v1375 = vadd.f32 0.0, %v1374
        %1376 = vdwg.mxu0
        %1377 = vrot.lane.b32.xlu0 %v1170, 112
        %v1378 = vpop.permute.xlu0 %1377
        %v1381 = vsel %vm606, %v1323, 0
        %1383 = vmatpush.msra.mxu0 0.0
        %1384 = vmatpush.msra.mxu0 0.0
        %1385 = vmatpush.msra.mxu0 0.0
        %1386 = vmatpush.msra.mxu0 0.0
        %1387 = vmatpush.msra.mxu0 0.0
        %1388 = vmatpush.msra.mxu0 0.0
        %1389 = vmatpush.msra.mxu0 0.0
        %1390 = vmatpush.msra.mxu0 0.0
        %1391 = vmatpush.msra.mxu0 0.0
        %1392 = vmatpush.msra.mxu0 0.0
        %1393 = vmatpush.msra.mxu0 0.0
        %1394 = vmatpush.msra.mxu0 0.0
        %1395 = vmatpush.msra.mxu0 0.0
        %1396 = vmatpush.msra.mxu0 0.0
        %1397 = vmatpush.msra.mxu0 0.0
        %1398 = vmatpush.msra.mxu0 %v1378
        %1399 = vmatmul.f32.gmra.mxu0 %v1381
        %v1400 = vpop.f32.mrf.mxu0
        %v1401 = vadd.f32 0.0, %v1400
        %1402 = vdwg.mxu0
        %1403 = vrot.lane.b32.xlu0 %v1172, 112
        %v1404 = vpop.permute.xlu0 %1403
        %v1407 = vsel %vm606, %v1324, 0
        %1409 = vmatpush.msra.mxu0 0.0
        %1410 = vmatpush.msra.mxu0 0.0
        %1411 = vmatpush.msra.mxu0 0.0
        %1412 = vmatpush.msra.mxu0 0.0
        %1413 = vmatpush.msra.mxu0 0.0
        %1414 = vmatpush.msra.mxu0 0.0
        %1415 = vmatpush.msra.mxu0 0.0
        %1416 = vmatpush.msra.mxu0 0.0
        %1417 = vmatpush.msra.mxu0 0.0
        %1418 = vmatpush.msra.mxu0 0.0
        %1419 = vmatpush.msra.mxu0 0.0
        %1420 = vmatpush.msra.mxu0 0.0
        %1421 = vmatpush.msra.mxu0 0.0
        %1422 = vmatpush.msra.mxu0 0.0
        %1423 = vmatpush.msra.mxu0 0.0
        %1424 = vmatpush.msra.mxu0 %v1404
        %1425 = vmatmul.f32.gmra.mxu0 %v1407
        %v1426 = vpop.f32.mrf.mxu0
        %v1427 = vadd.f32 0.0, %v1426
        %1428 = vdwg.mxu0
        %v1429 = vpack.c.bf16 %v1349, %v1349
        %v1430 = vpack.c.bf16 %v1375, %v1375
        %v1431 = vpack.c.bf16 %v1401, %v1401
        %v1432 = vpack.c.bf16 %v1427, %v1427
        %s1433 = scalar_lea.vmem %s7, 16
        %v1434 = vld [vmem:[%s1433] sm:$0xf]
        %v1435 = vld [vmem:[%s1433 + $0x4] sm:$0xf]
        %v1436 = vld [vmem:[%s1433 + $0x8] sm:$0xf]
        %v1437 = vld [vmem:[%s1433 + $0xc] sm:$0xf]
        %v1439 = vsel %vm606, %v1429, 0
        %v1442 = vsel %vm874, %v1434, 0
        %1444 = vmatpush.bf16.msra.mxu0 0
        %1445 = vmatpush.bf16.msra.mxu0 0
        %1446 = vmatpush.bf16.msra.mxu0 0
        %1447 = vmatpush.bf16.msra.mxu0 0
        %1448 = vmatpush.bf16.msra.mxu0 0
        %1449 = vmatpush.bf16.msra.mxu0 0
        %1450 = vmatpush.bf16.msra.mxu0 0
        %1451 = vmatpush.bf16.msra.mxu0 %v1442
        %1452 = vmatmul.bf16.gmra.mxu0 %v1439
        %v1453 = vpop.f32.mrf.mxu0
        %v1454 = vadd.f32 0.0, %v1453
        %v1455 = vpop.f32.mrf.mxu0
        %1456 = vdwg.mxu0
        %v1458 = vsel %vm606, %v1430, 0
        %v1461 = vsel %vm874, %v1435, 0
        %1463 = vmatpush.bf16.msra.mxu0 0
        %1464 = vmatpush.bf16.msra.mxu0 0
        %1465 = vmatpush.bf16.msra.mxu0 0
        %1466 = vmatpush.bf16.msra.mxu0 0
        %1467 = vmatpush.bf16.msra.mxu0 0
        %1468 = vmatpush.bf16.msra.mxu0 0
        %1469 = vmatpush.bf16.msra.mxu0 0
        %1470 = vmatpush.bf16.msra.mxu0 %v1461
        %1471 = vmatmul.bf16.gmra.mxu0 %v1458
        %v1472 = vpop.f32.mrf.mxu0
        %v1473 = vadd.f32 0.0, %v1472
        %v1474 = vpop.f32.mrf.mxu0
        %1475 = vdwg.mxu0
        %v1477 = vsel %vm606, %v1431, 0
        %v1480 = vsel %vm874, %v1436, 0
        %1482 = vmatpush.bf16.msra.mxu0 0
        %1483 = vmatpush.bf16.msra.mxu0 0
        %1484 = vmatpush.bf16.msra.mxu0 0
        %1485 = vmatpush.bf16.msra.mxu0 0
        %1486 = vmatpush.bf16.msra.mxu0 0
        %1487 = vmatpush.bf16.msra.mxu0 0
        %1488 = vmatpush.bf16.msra.mxu0 0
        %1489 = vmatpush.bf16.msra.mxu0 %v1480
        %1490 = vmatmul.bf16.gmra.mxu0 %v1477
        %v1491 = vpop.f32.mrf.mxu0
        %v1492 = vadd.f32 0.0, %v1491
        %v1493 = vpop.f32.mrf.mxu0
        %1494 = vdwg.mxu0
        %v1496 = vsel %vm606, %v1432, 0
        %v1499 = vsel %vm874, %v1437, 0
        %1501 = vmatpush.bf16.msra.mxu0 0
        %1502 = vmatpush.bf16.msra.mxu0 0
        %1503 = vmatpush.bf16.msra.mxu0 0
        %1504 = vmatpush.bf16.msra.mxu0 0
        %1505 = vmatpush.bf16.msra.mxu0 0
        %1506 = vmatpush.bf16.msra.mxu0 0
        %1507 = vmatpush.bf16.msra.mxu0 0
        %1508 = vmatpush.bf16.msra.mxu0 %v1499
        %1509 = vmatmul.bf16.gmra.mxu0 %v1496
        %v1510 = vpop.f32.mrf.mxu0
        %v1511 = vadd.f32 0.0, %v1510
        %v1512 = vpop.f32.mrf.mxu0
        %1513 = vdwg.mxu0
        %v1514 = vsel %vm530, %v1454, 0.0
        %v1515 = vsel %vm530, %v1473, 0.0
        %v1516 = vadd.f32 %v1514, %v1515
        %v1517 = vsel %vm530, %v1492, 0.0
        %v1518 = vadd.f32 %v1516, %v1517
        %v1519 = vsel %vm530, %v1511, 0.0
        %v1520 = vadd.f32 %v1518, %v1519
        %v1521 = vperm.slane %v1105, 0
        %v1522 = vadd.f32 %v1520, %v1521
        %v1523 = vadd.f32 %v1101, %v1522
        %v1524 = vsel %vm530, %v1523, 0.0
        %1525 = vadd.xlane.f32.xlu0 %v1524
        %v1526 = vpop.xlane.xlu0 %1525
        %v1527 = vmul.f32 %v1526, %v540
        %v1528 = vsub.f32 %v1523, %v1527
        %v1529 = vmul.f32 %v1528, %v1528
        %v1530 = vsel %vm530, %v1529, 0.0
        %1531 = vadd.xlane.f32.xlu0 %v1530
        %v1532 = vpop.xlane.xlu0 %1531
        %v1533 = vmul.f32 %v1532, %v540
        %v1534 = vadd.f32 %v1533, 1e-05
        %v1535 = vrsqrt.pop %v1534
        %v1536 = vmul.f32 %v1535, %v1534
        %v1537 = vmul.f32 %v1536, %v1535
        %v1538 = vmul.f32 0.5, %v1537
        %v1539 = vsub.f32 1.5, %v1538
        %v1540 = vmul.f32 %v1535, %v1539
        %vm1541 = vweird.f32 %v1534
        %vm1542 = vweird.f32 %v1535
        %vm1543 = vmor %vm1541, %vm1542
        %v1544 = vsel %vm1543, %v1535, %v1540
        %v1545 = vmul.f32 %v1528, %v1544
        %v1546 = vperm.slane %v1103, 2
        %v1547 = vmul.f32 %v1545, %v1546
        %v1548 = vperm.slane %v1103, 3
        %v1549 = vadd.f32 %v1547, %v1548
        %v1550 = vpack.c.bf16 %v1549, %v1549
        %s1551 = scalar_lea.vmem %s8, 16
        %v1552 = vld [vmem:[%s1551] sm:$0xf]
        %v1553 = vld [vmem:[%s1551 + $0x4] sm:$0xf]
        %v1554 = vld [vmem:[%s1551 + $0x8] sm:$0xf]
        %v1555 = vld [vmem:[%s1551 + $0xc] sm:$0xf]
        %s1556 = scalar_lea.vmem %s12, 1
        %v1557 = vld [vmem:[%s1556] sm:$0x1]
        %v1559 = vperm.slane %v1557, 0
        %v1565 = vunpack.c.l.b16 %v1552
        %v1566 = vunpack.c.l.b16 %v1553
        %v1567 = vunpack.c.l.b16 %v1554
        %v1568 = vunpack.c.l.b16 %v1555
        %v1569 = vpack.c.b16 %v1566, %v1565
        %v1570 = vpack.c.b16 %v1568, %v1567
        %v1574 = vsel %vm530, %v1550, 0
        %1576 = vmatpush.bf16.msra.mxu0 0
        %1577 = vmatpush.bf16.msra.mxu0 0
        %1578 = vmatpush.bf16.msra.mxu0 0
        %1579 = vmatpush.bf16.msra.mxu0 0
        %1580 = vmatpush.bf16.msra.mxu0 0
        %1581 = vmatpush.bf16.msra.mxu0 0
        %1582 = vmatpush.bf16.msra.mxu0 %v1570
        %1583 = vmatpush.bf16.msra.mxu0 %v1569
        %1584 = vmatmul.bf16.gmra.mxu0 %v1574
        %v1585 = vpop.f32.mrf.mxu0
        %v1586 = vadd.f32 %v1559, %v1585
        %v1587 = vpop.f32.mrf.mxu0
        %1588 = vdwg.mxu0
        %v1589 = vmax.f32 %v1586, 0.0
        %v1590 = vpack.c.bf16 %v1589, %v1589
        %s1591 = scalar_lea.vmem %s9, 64
        %v1592 = vld [vmem:[%s1591] sm:$0xf]
        %v1593 = vld [vmem:[%s1591 + $0x4] sm:$0xf]
        %v1594 = vld [vmem:[%s1591 + $0x8] sm:$0xf]
        %v1595 = vld [vmem:[%s1591 + $0xc] sm:$0xf]
        %v1596 = vld [vmem:[%s1591 + $0x10] sm:$0xf]
        %v1597 = vld [vmem:[%s1591 + $0x14] sm:$0xf]
        %v1598 = vld [vmem:[%s1591 + $0x18] sm:$0xf]
        %v1599 = vld [vmem:[%s1591 + $0x1c] sm:$0xf]
        %v1600 = vld [vmem:[%s1591 + $0x20] sm:$0xf]
        %v1601 = vld [vmem:[%s1591 + $0x24] sm:$0xf]
        %v1602 = vld [vmem:[%s1591 + $0x28] sm:$0xf]
        %v1603 = vld [vmem:[%s1591 + $0x2c] sm:$0xf]
        %v1604 = vld [vmem:[%s1591 + $0x30] sm:$0xf]
        %v1605 = vld [vmem:[%s1591 + $0x34] sm:$0xf]
        %v1606 = vld [vmem:[%s1591 + $0x38] sm:$0xf]
        %v1607 = vld [vmem:[%s1591 + $0x3c] sm:$0xf]
        %v1608 = vperm.slane %v1105, 1
        %v1625 = vunpack.c.l.b16 %v1592
        %v1626 = vunpack.c.l.b16 %v1593
        %v1627 = vunpack.c.l.b16 %v1594
        %v1628 = vunpack.c.l.b16 %v1595
        %v1629 = vunpack.c.l.b16 %v1596
        %v1630 = vunpack.c.l.b16 %v1597
        %v1631 = vunpack.c.l.b16 %v1598
        %v1632 = vunpack.c.l.b16 %v1599
        %v1633 = vunpack.c.l.b16 %v1600
        %v1634 = vunpack.c.l.b16 %v1601
        %v1635 = vunpack.c.l.b16 %v1602
        %v1636 = vunpack.c.l.b16 %v1603
        %v1637 = vunpack.c.l.b16 %v1604
        %v1638 = vunpack.c.l.b16 %v1605
        %v1639 = vunpack.c.l.b16 %v1606
        %v1640 = vunpack.c.l.b16 %v1607
        %v1641 = vpack.c.b16 %v1626, %v1625
        %v1642 = vpack.c.b16 %v1628, %v1627
        %v1643 = vpack.c.b16 %v1630, %v1629
        %v1644 = vpack.c.b16 %v1632, %v1631
        %v1645 = vpack.c.b16 %v1634, %v1633
        %v1646 = vpack.c.b16 %v1636, %v1635
        %v1647 = vpack.c.b16 %v1638, %v1637
        %v1648 = vpack.c.b16 %v1640, %v1639
        %1657 = vmatpush.bf16.msra.mxu0 %v1648
        %1658 = vmatpush.bf16.msra.mxu0 %v1647
        %1659 = vmatpush.bf16.msra.mxu0 %v1646
        %1660 = vmatpush.bf16.msra.mxu0 %v1645
        %1661 = vmatpush.bf16.msra.mxu0 %v1644
        %1662 = vmatpush.bf16.msra.mxu0 %v1643
        %1663 = vmatpush.bf16.msra.mxu0 %v1642
        %1664 = vmatpush.bf16.msra.mxu0 %v1641
        %1665 = vmatmul.bf16.gmra.mxu0 %v1590
        %v1666 = vpop.f32.mrf.mxu0
        %v1667 = vadd.f32 %v1608, %v1666
        %v1668 = vpop.f32.mrf.mxu0
        %1669 = vdwg.mxu0
        %v1670 = vadd.f32 %v1523, %v1667
        %v1671 = vld [vmem:[%s3] sm:$0x3]
        %v1672 = vsel %vm530, %v1670, 0.0
        %1673 = vadd.xlane.f32.xlu0 %v1672
        %v1674 = vpop.xlane.xlu0 %1673
        %v1675 = vmul.f32 %v1674, %v540
        %v1676 = vsub.f32 %v1670, %v1675
        %v1677 = vmul.f32 %v1676, %v1676
        %v1678 = vsel %vm530, %v1677, 0.0
        %1679 = vadd.xlane.f32.xlu0 %v1678
        %v1680 = vpop.xlane.xlu0 %1679
        %v1681 = vmul.f32 %v1680, %v540
        %v1682 = vadd.f32 %v1681, 1e-05
        %v1683 = vrsqrt.pop %v1682
        %v1684 = vmul.f32 %v1683, %v1682
        %v1685 = vmul.f32 %v1684, %v1683
        %v1686 = vmul.f32 0.5, %v1685
        %v1687 = vsub.f32 1.5, %v1686
        %v1688 = vmul.f32 %v1683, %v1687
        %vm1689 = vweird.f32 %v1682
        %vm1690 = vweird.f32 %v1683
        %vm1691 = vmor %vm1689, %vm1690
        %v1692 = vsel %vm1691, %v1683, %v1688
        %v1693 = vmul.f32 %v1676, %v1692
        %v1694 = vperm.slane %v1671, 0
        %v1695 = vmul.f32 %v1693, %v1694
        %v1696 = vperm.slane %v1671, 1
        %v1697 = vadd.f32 %v1695, %v1696
        %v1698 = vpack.c.bf16 %v1697, %v1697
        %v1699 = vld [vmem:[%s4] sm:$0xf]
        %v1700 = vld [vmem:[%s4 + $0x4] sm:$0xf]
        %v1701 = vld [vmem:[%s4 + $0x8] sm:$0xf]
        %v1702 = vld [vmem:[%s4 + $0xc] sm:$0xf]
        %v1703 = vld [vmem:[%s5] sm:$0x1]
        %v1705 = vperm.slane %v1703, 0
        %v1711 = vunpack.c.l.b16 %v1699
        %v1712 = vunpack.c.l.b16 %v1700
        %v1713 = vunpack.c.l.b16 %v1701
        %v1714 = vunpack.c.l.b16 %v1702
        %v1715 = vpack.c.b16 %v1712, %v1711
        %v1716 = vpack.c.b16 %v1714, %v1713
        %v1720 = vsel %vm530, %v1698, 0
        %1722 = vmatpush.bf16.msra.mxu0 0
        %1723 = vmatpush.bf16.msra.mxu0 0
        %1724 = vmatpush.bf16.msra.mxu0 0
        %1725 = vmatpush.bf16.msra.mxu0 0
        %1726 = vmatpush.bf16.msra.mxu0 0
        %1727 = vmatpush.bf16.msra.mxu0 0
        %1728 = vmatpush.bf16.msra.mxu0 %v1716
        %1729 = vmatpush.bf16.msra.mxu0 %v1715
        %1730 = vmatmul.bf16.gmra.mxu0 %v1720
        %v1731 = vpop.f32.mrf.mxu0
        %v1732 = vadd.f32 %v1705, %v1731
        %v1733 = vpop.f32.mrf.mxu0
        %1734 = vdwg.mxu0
        %1735 = vst [vmem:[%s431] sm:$0xff] %v1732
        %s1736 = sand.u32 %s313, 1
        %s1737 = scalar_lea.sflag [#allocation3], %s1736
        %s1738 = sand.u32 %s313, 1
        %s1739 = smul.addr %s1738, 8
        %s1740 = scalar_lea.vmem [#allocation2], %s1739
        // Predicated region
        $region73: #{tpu_custom_call.1} parent=71 // pred_check
          %p1741 = pneg %p323
        $region74: #{tpu_custom_call.1} parent=71 // pred_check_branch
          %1743 = sbr.rel (%p1741) target = $region76
        $region75: #{tpu_custom_call.1} parent=71 // pred_region
          %1745 = vsyncadd %s1737, 0
          %s1746 = smul.addr %s27, 8
          %s1747 = scalar_lea.hbm %s13, %s1746
          %s1749 = sshll.u32 %s1740, 4
          %s1750 = int_to_ptr.vmem [resolvable:$true] %s1749
          %s1751 = sshll.u32 %s1747, 4
          %s1752 = int_to_ptr.hbm [resolvable:$true] %s1751
          %1754 = dma.vmem_to_hbm [thread:$0]  %s1750, 128, %s1752, %s1737
        $region76: #{tpu_custom_call.1} parent=71 // pred_fallthru
          _
      $region72: #{tpu_custom_call.1} parent=5 // pred_fallthru
        _
      %p1755 = scmp.le.s32.totalorder 2, %s22
      // Predicated region
      $region77: #{tpu_custom_call.1} parent=5 // pred_check
        %p1756 = pneg %p1755
      $region78: #{tpu_custom_call.1} parent=5 // pred_check_branch
        %1758 = sbr.rel (%p1756) target = $region80
      $region79: #{tpu_custom_call.1} parent=5 // pred_region
        %s1759 = ssub.s32 %s22, 2
        // Predicated region
        $region81: #{tpu_custom_call.1} parent=79 // pred_check
          %p1760 = pneg %p329
        $region82: #{tpu_custom_call.1} parent=79 // pred_check_branch
          %1762 = sbr.rel (%p1760) target = $region84
        $region83: #{tpu_custom_call.1} parent=79 // pred_region
          %s1763 = sand.u32 %s314, 1
          %s1764 = scalar_lea.sflag [#allocation3], %s1763
          %s1765 = sand.u32 %s314, 1
          %s1766 = smul.addr %s1765, 8
          %s1767 = scalar_lea.vmem [#allocation2], %s1766
          %1769 = dma.done %s1764, 128
        $region84: #{tpu_custom_call.1} parent=79 // pred_fallthru
          _
      $region80: #{tpu_custom_call.1} parent=5 // pred_fallthru
        _
    $region6: #{tpu_custom_call.1} parent=1 // loop_footer
      %s26 = sadd.s32 1, %s22
    $region7: #{tpu_custom_call.1} parent=1 // loop_footer_branch
      %21 = sbr.rel target = $region3
    $region8: #{tpu_custom_call.1} parent=1 // loop_exit
      _
    %1770 = vsyncpa [#allocation3], 1
    %s1771 = scalar_lea.sflag [#allocation3], 1
    %1772 = vsyncpa %s1771, 1

</llo_original>
